<compile_context>
chip_gen: v7x
topology: tpu7x:2x2x1
jax: 0.10.0
libtpu: 0.0.40
codegen_flags: <defaults>
</compile_context>

<pallas_src>
import jax
import jax.numpy as jnp
from jax import lax
from jax.experimental import pallas as pl
from jax.experimental.pallas import tpu as pltpu

EPS = 1e-3  # BatchNorm2d(eps=0.001)


# -------------------- parameter setup (glue, plain JAX) --------------------

def fuse_conv_bn(kernel_hwio, gamma, beta, mean, var, eps=EPS):
    """Fold eval-mode BN into the preceding (bias-free) conv."""
    t = gamma / jnp.sqrt(var + eps)                        # (C_out,)
    return kernel_hwio * t[None, None, None, :], beta - mean * t


def build_params(key, c1, c2):
    """Deterministic ConvBnSilu params for cv1/cv2/cv3 plus the kernel-side
    arrangement (BN folded, weights pre-packed bf16 for the Pallas kernel)."""
    ks = jax.random.split(key, 6)

    def bn_params(k):
        kk = jax.random.split(k, 4)
        g = jax.random.normal(kk[0], (c2,), jnp.float32) * 0.1 + 1.0
        b = jax.random.normal(kk[1], (c2,), jnp.float32) * 0.1
        m = jax.random.normal(kk[2], (c2,), jnp.float32) * 0.1
        v = jax.random.uniform(kk[3], (c2,), jnp.float32, minval=0.5, maxval=1.5)
        return g, b, m, v

    w1 = jax.random.normal(ks[0], (1, 1, c1, c2), jnp.float32) * 0.3   # cv1 1x1
    w2 = jax.random.normal(ks[1], (1, 1, c1, c2), jnp.float32) * 0.3   # cv2 1x1
    w3 = jax.random.normal(ks[2], (3, 3, c2, c2), jnp.float32) * 0.2   # cv3 3x3 s2
    g1, b1, m1, v1 = bn_params(ks[3])
    g2, b2, m2, v2 = bn_params(ks[4])
    g3, b3, m3, v3 = bn_params(ks[5])

    ref_params = dict(w1=w1, g1=g1, b1=b1, m1=m1, v1=v1,
                      w2=w2, g2=g2, b2=b2, m2=m2, v2=v2,
                      w3=w3, g3=g3, b3=b3, m3=m3, v3=v3)

    fw1, fb1 = fuse_conv_bn(w1, g1, b1, m1, v1)
    fw2, fb2 = fuse_conv_bn(w2, g2, b2, m2, v2)
    fw3, fb3 = fuse_conv_bn(w3, g3, b3, m3, v3)

    bf = jnp.bfloat16

    # cv1: plain (C1, C2) matmul weight (bf16); bias stays f32 for the epilogue.
    w1m = fw1[0, 0].astype(bf)
    b1m = fb1.reshape(1, c2)
    # cv2: block-diagonal doubling so the 1x1 conv runs as ONE matmul on the
    # column-phase-merged activation layout (lanes = [even-col C1 | odd-col C1]).
    w2m = fw2[0, 0]
    w2d = jnp.zeros((2 * c1, 2 * c2), jnp.float32)
    w2d = w2d.at[:c1, :c2].set(w2m).at[c1:, c2:].set(w2m).astype(bf)
    b2d = jnp.concatenate([fb2, fb2]).reshape(1, 2 * c2)
    # cv3 (HWIO (3,3,C2,C2)): kw=1 and kw=2 taps stacked along K per kh so they
    # contract the natural [even|odd] phase-packed lanes; kw=0 kept separate
    # (applied to the odd lanes, result shifted by one output column in-kernel).
    w12 = jnp.stack([jnp.concatenate([fw3[kh, 1], fw3[kh, 2]], axis=0)
                     for kh in range(3)]).astype(bf)        # (3, 2*C2, C2)
    w0 = fw3[:, 0].astype(bf)                               # (3, C2, C2)
    b3m = fb3.reshape(1, c2)

    kern_params = dict(w1=w1m, b1=b1m, w2d=w2d, b2d=b2d, w12=w12, w0=w0, b3=b3m)
    return kern_params, ref_params


# ------------------------------ Pallas kernel ------------------------------

def transition_block_kernel(x_ref, xh_ref, w1_ref, b1_ref, w2d_ref, b2d_ref,
                            w12_ref, w0_ref, b3_ref, o_ref):
    # x_ref:   (2*Tho, Wo, 2*C1) bf16   x_ref[h, j, pc*C1+c] == x[n, 2*r*Tho+h, 2j+pc, c]
    # xh_ref:  (1, Wo, 2*C1)     bf16   input row just above the tile (top halo)
    # w1_ref:  (C1, C2)          bf16   cv1 1x1 weight (BN folded)
    # b1_ref:  (1, C2)           f32
    # w2d_ref: (2*C1, 2*C2)      bf16   cv2 1x1 weight, block-diag over column phase
    # b2d_ref: (1, 2*C2)         f32
    # w12_ref: (3, 2*C2, C2)     bf16   cv3 kw=1,2 taps stacked on K, per kh
    # w0_ref:  (3, C2, C2)       bf16   cv3 kw=0 tap, per kh
    # b3_ref:  (1, C2)           f32
    # o_ref:   (Tho, Wo, 2*C2)          channels = [cv3(cv2(x)) | cv1(maxpool(x))]
    Th2, Wo, C1x2 = x_ref.shape
    Tho, C1 = Th2 // 2, C1x2 // 2
    C2 = w1_ref.shape[1]
    r = pl.program_id(1)

    def silu(v):  # f32 epilogue; divide on the EUP via approx reciprocal
        return v * pl.reciprocal(1.0 + jnp.exp(-v), approx=True)

    def mm(a, b):
        return jnp.dot(a, b, preferred_element_type=jnp.float32)

    # ---- cv2: 1x1 conv + BN + SiLU over the whole tile as ONE matmul ----
    y2 = silu(mm(x_ref[...].reshape(Th2 * Wo, 2 * C1), w2d_ref[...]) + b2d_ref[...])
    y2 = y2.astype(jnp.bfloat16).reshape(Tho, 2, Wo, 2 * C2)
    ye, yo = y2[:, 0], y2[:, 1]                 # even / odd input rows, (Tho, Wo, 2*C2)

    # ---- cv2 on the 1-row top halo (zero when r == 0: that row is conv padding) ----
    y2h = silu(mm(xh_ref[0], w2d_ref[...]) + b2d_ref[...])            # (Wo, 2*C2) f32
    y2h = jnp.where(r == 0, 0.0, y2h).astype(jnp.bfloat16)[None]      # (1, Wo, 2*C2)

    # kh=0 reads the odd rows shifted down by one output row (halo row on top).
    yo_shift = y2h if Tho == 1 else jnp.concatenate([y2h, yo[:Tho - 1]], axis=0)
    rows = (yo_shift, ye, yo)                   # kh = 0, 1, 2

    # ---- cv3: 3x3 stride-2 conv + BN + SiLU (bias folded into the acc init).
    #      kw=1,2 contract the natural [even|odd] lanes (no rearrangement);
    #      kw=0 is accumulated unshifted and shifted by one output column once. ----
    acc = jnp.broadcast_to(b3_ref[...], (Tho * Wo, C2))
    p0 = jnp.zeros((Tho * Wo, C2), jnp.float32)
    for kh in range(3):
        rk = rows[kh].reshape(Tho * Wo, 2 * C2)
        acc = acc + mm(rk, w12_ref[kh])         # kw=1,2 merged: K = 2*C2
        p0 = p0 + mm(rk[:, C2:], w0_ref[kh])    # kw=0 (odd lanes): K = C2
    p0 = p0.reshape(Tho, Wo, C2)
    p0 = jnp.concatenate(                       # +1 output-column shift (left edge = pad)
        [jnp.zeros((Tho, 1, C2), jnp.float32), p0[:, :Wo - 1]], axis=1)
    y3 = silu(acc + p0.reshape(Tho * Wo, C2))   # (Tho*Wo, C2) f32

    # ---- cv1 branch: 2x2/2 maxpool + 1x1 conv + BN + SiLU (one matmul) ----
    x4 = x_ref[...].reshape(Tho, 2, Wo, 2 * C1)
    m = jnp.maximum(x4[:, 0], x4[:, 1])                     # max over the row pair
    xm = jnp.maximum(m[..., :C1], m[..., C1:])              # max over the column pair
    y1 = silu(mm(xm.reshape(Tho * Wo, C1), w1_ref[...]) + b1_ref[...])

    # ---- torch.cat([x_2, x_1], channel): ONE lane-dense store ----
    o_ref[...] = jnp.concatenate([y3, y1], axis=-1).reshape(
        Tho, Wo, 2 * C2).astype(o_ref.dtype)


# ------------------------------ wrappers ------------------------------

def transition_block_nhwc(x_nhwc, kp, *, tile_ho=None):
    N, H, W, C1 = x_nhwc.shape
    assert H % 2 == 0 and W % 2 == 0
    C2 = kp["w1"].shape[1]
    Ho, Wo = H // 2, W // 2
    if tile_ho is None:
        # Production sizing: keep (input tile + cv2 tile + acc) well inside the
        # v7x 64 MiB VMEM / vreg budget; shrink (or additionally tile columns)
        # for very wide images / large channel counts.
        tile_ho = min(16, Ho)
    assert Ho % tile_ho == 0, (Ho, tile_ho)  # TODO(synk): pad the last row tile for ragged Ho
    n_rt = Ho // tile_ho

    # Free row-major regroup that packs the even/odd column phase into lanes;
    # the bf16 cast fuses into the same pass and halves the kernel's input DMA
    # (epilogue and output stay f32).
    x_ph = x_nhwc.reshape(N, H, Wo, 2 * C1).astype(jnp.bfloat16)

    return pl.pallas_call(
        transition_block_kernel,
        out_shape=jax.ShapeDtypeStruct((N, Ho, Wo, 2 * C2), x_nhwc.dtype),
        grid=(N, n_rt),
        in_specs=[
            # main body of the tile: 2*tile_ho input rows
            pl.BlockSpec((None, 2 * tile_ho, Wo, 2 * C1),
                         lambda n, r: (n, r, 0, 0)),
            # 1-row top halo (clamped at r=0; its contribution is zeroed in-kernel)
            pl.BlockSpec((None, 1, Wo, 2 * C1),
                         lambda n, r: (n, jnp.maximum(2 * r * tile_ho - 1, 0), 0, 0)),
            pl.BlockSpec((C1, C2), lambda n, r: (0, 0)),
            pl.BlockSpec((1, C2), lambda n, r: (0, 0)),
            pl.BlockSpec((2 * C1, 2 * C2), lambda n, r: (0, 0)),
            pl.BlockSpec((1, 2 * C2), lambda n, r: (0, 0)),
            pl.BlockSpec((3, 2 * C2, C2), lambda n, r: (0, 0, 0)),
            pl.BlockSpec((3, C2, C2), lambda n, r: (0, 0, 0)),
            pl.BlockSpec((1, C2), lambda n, r: (0, 0)),
        ],
        out_specs=pl.BlockSpec((None, tile_ho, Wo, 2 * C2),
                               lambda n, r: (n, r, 0, 0)),
        compiler_params=pltpu.CompilerParams(
            dimension_semantics=("parallel", "parallel"),
            vmem_limit_bytes=48 * 1024 * 1024),
    )(x_ph, x_ph, kp["w1"], kp["b1"], kp["w2d"], kp["b2d"],
      kp["w12"], kp["w0"], kp["b3"])


def transition_block_nchw(x_nchw, kp, *, tile_ho=None):
    # The transposes exist only to present the PyTorch NCHW interface; in a real
    # network keep activations NHWC (bf16) end-to-end so no extra HBM passes.
    x_nhwc = jnp.transpose(x_nchw, (0, 2, 3, 1))
    y_nhwc = transition_block_nhwc(x_nhwc, kp, tile_ho=tile_ho)
    return jnp.transpose(y_nhwc, (0, 3, 1, 2))


# ---------------------- pure-JAX reference (branch-wise) -------------------

def transition_block_reference_nchw(x_nchw, p):
    x = jnp.transpose(x_nchw, (0, 2, 3, 1))  # NHWC

    def bn(y, g, b, m, v):
        return (y - m) / jnp.sqrt(v + EPS) * g + b

    def silu(v):
        return v * jax.nn.sigmoid(v)

    dn = ("NHWC", "HWIO", "NHWC")

    # branch 2: cv2 (1x1, s1) -> cv3 (3x3, s2, p1)
    y2 = lax.conv_general_dilated(x, p["w2"], (1, 1), ((0, 0), (0, 0)),
                                  dimension_numbers=dn)
    y2 = silu(bn(y2, p["g2"], p["b2"], p["m2"], p["v2"]))
    y3 = lax.conv_general_dilated(y2, p["w3"], (2, 2), ((1, 1), (1, 1)),
                                  dimension_numbers=dn)
    y3 = silu(bn(y3, p["g3"], p["b3"], p["m3"], p["v3"]))

    # branch 1: 2x2/2 maxpool -> cv1 (1x1, s1)
    xm = lax.reduce_window(x, -jnp.inf, lax.max,
                           (1, 2, 2, 1), (1, 2, 2, 1), "VALID")
    y1 = lax.conv_general_dilated(xm, p["w1"], (1, 1), ((0, 0), (0, 0)),
                                  dimension_numbers=dn)
    y1 = silu(bn(y1, p["g1"], p["b1"], p["m1"], p["v1"]))

    out = jnp.concatenate([y3, y1], axis=-1)   # torch.cat([x_2, x_1], 1)
    return jnp.transpose(out, (0, 3, 1, 2))


# ----------------------------------- main -----------------------------------

if __name__ == "__main__":
    key = jax.random.PRNGKey(0)
    k_x, k_p = jax.random.split(key)

    N, C1, H, W = 2, 4, 16, 16
    C2 = 4
    x = jax.random.normal(k_x, (N, C1, H, W), jnp.float32)   # PyTorch NCHW input

    kern_params, ref_params = build_params(k_p, C1, C2)

    # tile_ho=4 -> grid (N=2, row_tiles=2): exercises both the zero-halo (r=0)
    # and real-halo (r=1) paths of the row-tiled kernel.
    y = transition_block_nchw(x, kern_params, tile_ho=4)
    y = jax.block_until_ready(y)
    assert y.shape == (N, 2 * C2, H // 2, W // 2), y.shape

    y_ref = transition_block_reference_nchw(x, ref_params)
    max_err = float(jnp.max(jnp.abs(y - y_ref)))
    # bf16 matmul operands (f32 accumulation + f32 epilogue) -> relaxed tolerance.
    assert jnp.allclose(y, y_ref, atol=5e-2, rtol=5e-2), f"mismatch: {max_err}"

    print("KERNEL_OK")
</pallas_src>

<mosaic_0001>
module attributes {stable_mosaic.version = 11 : i64} {
  func.func @transition_block_kernel(%arg0: i32, %arg1: i32, %arg2: memref<1x8x8x8xbf16, #tpu.memory_space<vmem>>, %arg3: memref<1x1x8x8xbf16, #tpu.memory_space<vmem>>, %arg4: memref<4x4xbf16, #tpu.memory_space<vmem>>, %arg5: memref<1x4xf32, #tpu.memory_space<vmem>>, %arg6: memref<8x8xbf16, #tpu.memory_space<vmem>>, %arg7: memref<1x8xf32, #tpu.memory_space<vmem>>, %arg8: memref<3x8x4xbf16, #tpu.memory_space<vmem>>, %arg9: memref<3x4x4xbf16, #tpu.memory_space<vmem>>, %arg10: memref<1x4xf32, #tpu.memory_space<vmem>>, %arg11: memref<1x4x8x8xf32, #tpu.memory_space<vmem>>) attributes {dimension_semantics = [#tpu.dimension_semantics<parallel>, #tpu.dimension_semantics<parallel>], iteration_bounds = array<i64: 2, 2>, scalar_prefetch = 0 : i64, scratch_operands = 0 : i64, tpu.core_type = #tpu.core_type<tc>, window_params = [{transform_indices = @transform_0, window_bounds = array<i64: 1, 8, 8, 8>}, {transform_indices = @transform_1, window_bounds = array<i64: 1, 1, 8, 8>}, {pipeline_mode = #tpu.pipeline_mode<synchronous>, transform_indices = @transform_2, window_bounds = array<i64: 4, 4>}, {pipeline_mode = #tpu.pipeline_mode<synchronous>, transform_indices = @transform_3, window_bounds = array<i64: 1, 4>}, {pipeline_mode = #tpu.pipeline_mode<synchronous>, transform_indices = @transform_4, window_bounds = array<i64: 8, 8>}, {pipeline_mode = #tpu.pipeline_mode<synchronous>, transform_indices = @transform_5, window_bounds = array<i64: 1, 8>}, {pipeline_mode = #tpu.pipeline_mode<synchronous>, transform_indices = @transform_6, window_bounds = array<i64: 3, 8, 4>}, {pipeline_mode = #tpu.pipeline_mode<synchronous>, transform_indices = @transform_7, window_bounds = array<i64: 3, 4, 4>}, {pipeline_mode = #tpu.pipeline_mode<synchronous>, transform_indices = @transform_8, window_bounds = array<i64: 1, 4>}, {transform_indices = @transform_9, window_bounds = array<i64: 1, 4, 8, 8>}]} {
    %c0 = arith.constant 0 : index
    %c0_0 = arith.constant 0 : index
    %c0_1 = arith.constant 0 : index
    %c0_2 = arith.constant 0 : index
    %0 = vector.load %arg2[%c0, %c0_0, %c0_1, %c0_2] : memref<1x8x8x8xbf16, #tpu.memory_space<vmem>>, vector<1x8x8x8xbf16>
    %1 = vector.shape_cast %0 : vector<1x8x8x8xbf16> to vector<8x8x8xbf16>
    %2 = vector.shape_cast %1 : vector<8x8x8xbf16> to vector<64x8xbf16>
    %c0_3 = arith.constant 0 : index
    %c0_4 = arith.constant 0 : index
    %3 = vector.load %arg6[%c0_3, %c0_4] : memref<8x8xbf16, #tpu.memory_space<vmem>>, vector<8x8xbf16>
    %cst = arith.constant dense<0.000000e+00> : vector<64x8xf32>
    %4 = tpu.matmul %2, %3, %cst {dimension_numbers = #tpu.dot_dimension_numbers<[1], [0], [0], [1], [0, 0, 1, 1], [], []>} : vector<64x8xbf16>, vector<8x8xbf16>, vector<64x8xf32> -> vector<64x8xf32>
    %c0_5 = arith.constant 0 : index
    %c0_6 = arith.constant 0 : index
    %5 = vector.load %arg7[%c0_5, %c0_6] : memref<1x8xf32, #tpu.memory_space<vmem>>, vector<1x8xf32>
    %6 = vector.broadcast %5 : vector<1x8xf32> to vector<64x8xf32>
    %7 = arith.addf %4, %6 : vector<64x8xf32>
    %cst_7 = arith.constant 0.000000e+00 : f32
    %8 = vector.broadcast %cst_7 : f32 to vector<64x8xf32>
    %9 = arith.subf %8, %7 : vector<64x8xf32>
    %10 = math.exp %9 : vector<64x8xf32>
    %cst_8 = arith.constant 1.000000e+00 : f32
    %11 = vector.broadcast %cst_8 : f32 to vector<64x8xf32>
    %12 = arith.addf %11, %10 : vector<64x8xf32>
    %13 = tpu.reciprocal %12 {approx = true} : vector<64x8xf32> -> vector<64x8xf32>
    %14 = arith.mulf %7, %13 : vector<64x8xf32>
    %15 = arith.truncf %14 : vector<64x8xf32> to vector<64x8xbf16>
    %16 = vector.shape_cast %15 : vector<64x8xbf16> to vector<4x2x8x8xbf16>
    %17 = vector.extract_strided_slice %16 {offsets = [0, 0, 0, 0], sizes = [4, 1, 8, 8], strides = [1, 1, 1, 1]} : vector<4x2x8x8xbf16> to vector<4x1x8x8xbf16>
    %18 = vector.shape_cast %17 : vector<4x1x8x8xbf16> to vector<4x8x8xbf16>
    %19 = vector.extract_strided_slice %16 {offsets = [0, 1, 0, 0], sizes = [4, 1, 8, 8], strides = [1, 1, 1, 1]} : vector<4x2x8x8xbf16> to vector<4x1x8x8xbf16>
    %20 = vector.shape_cast %19 : vector<4x1x8x8xbf16> to vector<4x8x8xbf16>
    %c0_9 = arith.constant 0 : index
    %c0_10 = arith.constant 0 : index
    %c0_11 = arith.constant 0 : index
    %c0_12 = arith.constant 0 : index
    %21 = vector.load %arg3[%c0_9, %c0_10, %c0_11, %c0_12] : memref<1x1x8x8xbf16, #tpu.memory_space<vmem>>, vector<1x1x8x8xbf16>
    %22 = vector.shape_cast %21 : vector<1x1x8x8xbf16> to vector<8x8xbf16>
    %c0_13 = arith.constant 0 : index
    %c0_14 = arith.constant 0 : index
    %23 = vector.load %arg6[%c0_13, %c0_14] : memref<8x8xbf16, #tpu.memory_space<vmem>>, vector<8x8xbf16>
    %cst_15 = arith.constant dense<0.000000e+00> : vector<8x8xf32>
    %24 = tpu.matmul %22, %23, %cst_15 {dimension_numbers = #tpu.dot_dimension_numbers<[1], [0], [0], [1], [0, 0, 1, 1], [], []>} : vector<8x8xbf16>, vector<8x8xbf16>, vector<8x8xf32> -> vector<8x8xf32>
    %c0_16 = arith.constant 0 : index
    %c0_17 = arith.constant 0 : index
    %25 = vector.load %arg7[%c0_16, %c0_17] : memref<1x8xf32, #tpu.memory_space<vmem>>, vector<1x8xf32>
    %26 = vector.broadcast %25 : vector<1x8xf32> to vector<8x8xf32>
    %27 = arith.addf %24, %26 : vector<8x8xf32>
    %cst_18 = arith.constant 0.000000e+00 : f32
    %28 = vector.broadcast %cst_18 : f32 to vector<8x8xf32>
    %29 = arith.subf %28, %27 : vector<8x8xf32>
    %30 = math.exp %29 : vector<8x8xf32>
    %cst_19 = arith.constant 1.000000e+00 : f32
    %31 = vector.broadcast %cst_19 : f32 to vector<8x8xf32>
    %32 = arith.addf %31, %30 : vector<8x8xf32>
    %33 = tpu.reciprocal %32 {approx = true} : vector<8x8xf32> -> vector<8x8xf32>
    %34 = arith.mulf %27, %33 : vector<8x8xf32>
    %c0_i32 = arith.constant 0 : i32
    %35 = arith.cmpi eq, %arg1, %c0_i32 : i32
    %cst_20 = arith.constant 0.000000e+00 : f32
    %36 = vector.broadcast %cst_20 : f32 to vector<8x8xf32>
    %37 = arith.select %35, %36, %34 : vector<8x8xf32>
    %38 = arith.truncf %37 : vector<8x8xf32> to vector<8x8xbf16>
    %39 = vector.shape_cast %38 : vector<8x8xbf16> to vector<1x8x8xbf16>
    %40 = vector.extract_strided_slice %20 {offsets = [0, 0, 0], sizes = [3, 8, 8], strides = [1, 1, 1]} : vector<4x8x8xbf16> to vector<3x8x8xbf16>
    %41 = tpu.concatenate %39, %40 in 0 : vector<1x8x8xbf16>, vector<3x8x8xbf16> -> vector<4x8x8xbf16>
    %c0_21 = arith.constant 0 : index
    %c0_22 = arith.constant 0 : index
    %42 = vector.load %arg10[%c0_21, %c0_22] : memref<1x4xf32, #tpu.memory_space<vmem>>, vector<1x4xf32>
    %43 = vector.shape_cast %42 : vector<1x4xf32> to vector<1x4xf32>
    %44 = vector.broadcast %43 : vector<1x4xf32> to vector<32x4xf32>
    %cst_23 = arith.constant 0.000000e+00 : f32
    %45 = vector.broadcast %cst_23 : f32 to vector<32x4xf32>
    %46 = vector.shape_cast %41 : vector<4x8x8xbf16> to vector<32x8xbf16>
    %c0_24 = arith.constant 0 : index
    %c0_25 = arith.constant 0 : index
    %c0_26 = arith.constant 0 : index
    %47 = vector.load %arg8[%c0_24, %c0_25, %c0_26] : memref<3x8x4xbf16, #tpu.memory_space<vmem>>, vector<1x8x4xbf16>
    %48 = vector.shape_cast %47 : vector<1x8x4xbf16> to vector<8x4xbf16>
    %cst_27 = arith.constant dense<0.000000e+00> : vector<32x4xf32>
    %49 = tpu.matmul %46, %48, %cst_27 {dimension_numbers = #tpu.dot_dimension_numbers<[1], [0], [0], [1], [0, 0, 1, 1], [], []>} : vector<32x8xbf16>, vector<8x4xbf16>, vector<32x4xf32> -> vector<32x4xf32>
    %50 = arith.addf %44, %49 : vector<32x4xf32>
    %51 = vector.extract_strided_slice %46 {offsets = [0, 4], sizes = [32, 4], strides = [1, 1]} : vector<32x8xbf16> to vector<32x4xbf16>
    %c0_28 = arith.constant 0 : index
    %c0_29 = arith.constant 0 : index
    %c0_30 = arith.constant 0 : index
    %52 = vector.load %arg9[%c0_28, %c0_29, %c0_30] : memref<3x4x4xbf16, #tpu.memory_space<vmem>>, vector<1x4x4xbf16>
    %53 = vector.shape_cast %52 : vector<1x4x4xbf16> to vector<4x4xbf16>
    %cst_31 = arith.constant dense<0.000000e+00> : vector<32x4xf32>
    %54 = tpu.matmul %51, %53, %cst_31 {dimension_numbers = #tpu.dot_dimension_numbers<[1], [0], [0], [1], [0, 0, 1, 1], [], []>} : vector<32x4xbf16>, vector<4x4xbf16>, vector<32x4xf32> -> vector<32x4xf32>
    %55 = arith.addf %45, %54 : vector<32x4xf32>
    %56 = vector.shape_cast %18 : vector<4x8x8xbf16> to vector<32x8xbf16>
    %c1 = arith.constant 1 : index
    %c0_32 = arith.constant 0 : index
    %c0_33 = arith.constant 0 : index
    %57 = vector.load %arg8[%c1, %c0_32, %c0_33] : memref<3x8x4xbf16, #tpu.memory_space<vmem>>, vector<1x8x4xbf16>
    %58 = vector.shape_cast %57 : vector<1x8x4xbf16> to vector<8x4xbf16>
    %cst_34 = arith.constant dense<0.000000e+00> : vector<32x4xf32>
    %59 = tpu.matmul %56, %58, %cst_34 {dimension_numbers = #tpu.dot_dimension_numbers<[1], [0], [0], [1], [0, 0, 1, 1], [], []>} : vector<32x8xbf16>, vector<8x4xbf16>, vector<32x4xf32> -> vector<32x4xf32>
    %60 = arith.addf %50, %59 : vector<32x4xf32>
    %61 = vector.extract_strided_slice %56 {offsets = [0, 4], sizes = [32, 4], strides = [1, 1]} : vector<32x8xbf16> to vector<32x4xbf16>
    %c1_35 = arith.constant 1 : index
    %c0_36 = arith.constant 0 : index
    %c0_37 = arith.constant 0 : index
    %62 = vector.load %arg9[%c1_35, %c0_36, %c0_37] : memref<3x4x4xbf16, #tpu.memory_space<vmem>>, vector<1x4x4xbf16>
    %63 = vector.shape_cast %62 : vector<1x4x4xbf16> to vector<4x4xbf16>
    %cst_38 = arith.constant dense<0.000000e+00> : vector<32x4xf32>
    %64 = tpu.matmul %61, %63, %cst_38 {dimension_numbers = #tpu.dot_dimension_numbers<[1], [0], [0], [1], [0, 0, 1, 1], [], []>} : vector<32x4xbf16>, vector<4x4xbf16>, vector<32x4xf32> -> vector<32x4xf32>
    %65 = arith.addf %55, %64 : vector<32x4xf32>
    %66 = vector.shape_cast %20 : vector<4x8x8xbf16> to vector<32x8xbf16>
    %c2 = arith.constant 2 : index
    %c0_39 = arith.constant 0 : index
    %c0_40 = arith.constant 0 : index
    %67 = vector.load %arg8[%c2, %c0_39, %c0_40] : memref<3x8x4xbf16, #tpu.memory_space<vmem>>, vector<1x8x4xbf16>
    %68 = vector.shape_cast %67 : vector<1x8x4xbf16> to vector<8x4xbf16>
    %cst_41 = arith.constant dense<0.000000e+00> : vector<32x4xf32>
    %69 = tpu.matmul %66, %68, %cst_41 {dimension_numbers = #tpu.dot_dimension_numbers<[1], [0], [0], [1], [0, 0, 1, 1], [], []>} : vector<32x8xbf16>, vector<8x4xbf16>, vector<32x4xf32> -> vector<32x4xf32>
    %70 = arith.addf %60, %69 : vector<32x4xf32>
    %71 = vector.extract_strided_slice %66 {offsets = [0, 4], sizes = [32, 4], strides = [1, 1]} : vector<32x8xbf16> to vector<32x4xbf16>
    %c2_42 = arith.constant 2 : index
    %c0_43 = arith.constant 0 : index
    %c0_44 = arith.constant 0 : index
    %72 = vector.load %arg9[%c2_42, %c0_43, %c0_44] : memref<3x4x4xbf16, #tpu.memory_space<vmem>>, vector<1x4x4xbf16>
    %73 = vector.shape_cast %72 : vector<1x4x4xbf16> to vector<4x4xbf16>
    %cst_45 = arith.constant dense<0.000000e+00> : vector<32x4xf32>
    %74 = tpu.matmul %71, %73, %cst_45 {dimension_numbers = #tpu.dot_dimension_numbers<[1], [0], [0], [1], [0, 0, 1, 1], [], []>} : vector<32x4xbf16>, vector<4x4xbf16>, vector<32x4xf32> -> vector<32x4xf32>
    %75 = arith.addf %65, %74 : vector<32x4xf32>
    %76 = vector.shape_cast %75 : vector<32x4xf32> to vector<4x8x4xf32>
    %cst_46 = arith.constant 0.000000e+00 : f32
    %77 = vector.broadcast %cst_46 : f32 to vector<4x1x4xf32>
    %78 = vector.extract_strided_slice %76 {offsets = [0, 0, 0], sizes = [4, 7, 4], strides = [1, 1, 1]} : vector<4x8x4xf32> to vector<4x7x4xf32>
    %79 = tpu.concatenate %77, %78 in 1 : vector<4x1x4xf32>, vector<4x7x4xf32> -> vector<4x8x4xf32>
    %80 = vector.shape_cast %79 : vector<4x8x4xf32> to vector<32x4xf32>
    %81 = arith.addf %70, %80 : vector<32x4xf32>
    %cst_47 = arith.constant 0.000000e+00 : f32
    %82 = vector.broadcast %cst_47 : f32 to vector<32x4xf32>
    %83 = arith.subf %82, %81 : vector<32x4xf32>
    %84 = math.exp %83 : vector<32x4xf32>
    %cst_48 = arith.constant 1.000000e+00 : f32
    %85 = vector.broadcast %cst_48 : f32 to vector<32x4xf32>
    %86 = arith.addf %85, %84 : vector<32x4xf32>
    %87 = tpu.reciprocal %86 {approx = true} : vector<32x4xf32> -> vector<32x4xf32>
    %88 = arith.mulf %81, %87 : vector<32x4xf32>
    %c0_49 = arith.constant 0 : index
    %c0_50 = arith.constant 0 : index
    %c0_51 = arith.constant 0 : index
    %c0_52 = arith.constant 0 : index
    %89 = vector.load %arg2[%c0_49, %c0_50, %c0_51, %c0_52] : memref<1x8x8x8xbf16, #tpu.memory_space<vmem>>, vector<1x8x8x8xbf16>
    %90 = vector.shape_cast %89 : vector<1x8x8x8xbf16> to vector<8x8x8xbf16>
    %91 = vector.shape_cast %90 : vector<8x8x8xbf16> to vector<4x2x8x8xbf16>
    %92 = vector.extract_strided_slice %91 {offsets = [0, 0, 0, 0], sizes = [4, 1, 8, 8], strides = [1, 1, 1, 1]} : vector<4x2x8x8xbf16> to vector<4x1x8x8xbf16>
    %93 = vector.shape_cast %92 : vector<4x1x8x8xbf16> to vector<4x8x8xbf16>
    %94 = vector.extract_strided_slice %91 {offsets = [0, 1, 0, 0], sizes = [4, 1, 8, 8], strides = [1, 1, 1, 1]} : vector<4x2x8x8xbf16> to vector<4x1x8x8xbf16>
    %95 = vector.shape_cast %94 : vector<4x1x8x8xbf16> to vector<4x8x8xbf16>
    %96 = arith.maximumf %93, %95 : vector<4x8x8xbf16>
    %97 = vector.extract_strided_slice %96 {offsets = [0, 0, 0], sizes = [4, 8, 4], strides = [1, 1, 1]} : vector<4x8x8xbf16> to vector<4x8x4xbf16>
    %98 = vector.extract_strided_slice %96 {offsets = [0, 0, 4], sizes = [4, 8, 4], strides = [1, 1, 1]} : vector<4x8x8xbf16> to vector<4x8x4xbf16>
    %99 = arith.maximumf %97, %98 : vector<4x8x4xbf16>
    %100 = vector.shape_cast %99 : vector<4x8x4xbf16> to vector<32x4xbf16>
    %c0_53 = arith.constant 0 : index
    %c0_54 = arith.constant 0 : index
    %101 = vector.load %arg4[%c0_53, %c0_54] : memref<4x4xbf16, #tpu.memory_space<vmem>>, vector<4x4xbf16>
    %cst_55 = arith.constant dense<0.000000e+00> : vector<32x4xf32>
    %102 = tpu.matmul %100, %101, %cst_55 {dimension_numbers = #tpu.dot_dimension_numbers<[1], [0], [0], [1], [0, 0, 1, 1], [], []>} : vector<32x4xbf16>, vector<4x4xbf16>, vector<32x4xf32> -> vector<32x4xf32>
    %c0_56 = arith.constant 0 : index
    %c0_57 = arith.constant 0 : index
    %103 = vector.load %arg5[%c0_56, %c0_57] : memref<1x4xf32, #tpu.memory_space<vmem>>, vector<1x4xf32>
    %104 = vector.broadcast %103 : vector<1x4xf32> to vector<32x4xf32>
    %105 = arith.addf %102, %104 : vector<32x4xf32>
    %cst_58 = arith.constant 0.000000e+00 : f32
    %106 = vector.broadcast %cst_58 : f32 to vector<32x4xf32>
    %107 = arith.subf %106, %105 : vector<32x4xf32>
    %108 = math.exp %107 : vector<32x4xf32>
    %cst_59 = arith.constant 1.000000e+00 : f32
    %109 = vector.broadcast %cst_59 : f32 to vector<32x4xf32>
    %110 = arith.addf %109, %108 : vector<32x4xf32>
    %111 = tpu.reciprocal %110 {approx = true} : vector<32x4xf32> -> vector<32x4xf32>
    %112 = arith.mulf %105, %111 : vector<32x4xf32>
    %113 = tpu.concatenate %88, %112 in 1 : vector<32x4xf32>, vector<32x4xf32> -> vector<32x8xf32>
    %114 = vector.shape_cast %113 : vector<32x8xf32> to vector<4x8x8xf32>
    %c0_60 = arith.constant 0 : index
    %c0_61 = arith.constant 0 : index
    %c0_62 = arith.constant 0 : index
    %c0_63 = arith.constant 0 : index
    %115 = vector.load %arg11[%c0_60, %c0_61, %c0_62, %c0_63] : memref<1x4x8x8xf32, #tpu.memory_space<vmem>>, vector<1x4x8x8xf32>
    %116 = vector.shape_cast %115 : vector<1x4x8x8xf32> to vector<4x8x8xf32>
    %117 = vector.shape_cast %114 : vector<4x8x8xf32> to vector<1x4x8x8xf32>
    tpu.vector_store %arg11[%c0_60, %c0_61, %c0_62, %c0_63], %117 {strides = array<i32>} : memref<1x4x8x8xf32, #tpu.memory_space<vmem>>, vector<1x4x8x8xf32>,
    return
  }
  func.func @transform_0(%arg0: i32, %arg1: i32) -> (i32, i32, i32, i32) {
    %c0_i32 = arith.constant 0 : i32
    %c0_i32_0 = arith.constant 0 : i32
    %c0_i32_1 = arith.constant 0 : i32
    return %arg0, %arg1, %c0_i32, %c0_i32_0 : i32, i32, i32, i32
  }
  func.func @transform_1(%arg0: i32, %arg1: i32) -> (i32, i32, i32, i32) {
    %c2_i32 = arith.constant 2 : i32
    %0 = arith.muli %c2_i32, %arg1 : i32
    %c4_i32 = arith.constant 4 : i32
    %1 = arith.muli %0, %c4_i32 : i32
    %c1_i32 = arith.constant 1 : i32
    %2 = arith.subi %1, %c1_i32 : i32
    %c0_i32 = arith.constant 0 : i32
    %3 = arith.maxsi %2, %c0_i32 : i32
    %c0_i32_0 = arith.constant 0 : i32
    %c0_i32_1 = arith.constant 0 : i32
    %c0_i32_2 = arith.constant 0 : i32
    return %arg0, %3, %c0_i32_0, %c0_i32_1 : i32, i32, i32, i32
  }
  func.func @transform_2(%arg0: i32, %arg1: i32) -> (i32, i32) {
    %c0_i32 = arith.constant 0 : i32
    %c0_i32_0 = arith.constant 0 : i32
    %c0_i32_1 = arith.constant 0 : i32
    return %c0_i32, %c0_i32_0 : i32, i32
  }
  func.func @transform_3(%arg0: i32, %arg1: i32) -> (i32, i32) {
    %c0_i32 = arith.constant 0 : i32
    %c0_i32_0 = arith.constant 0 : i32
    %c0_i32_1 = arith.constant 0 : i32
    return %c0_i32, %c0_i32_0 : i32, i32
  }
  func.func @transform_4(%arg0: i32, %arg1: i32) -> (i32, i32) {
    %c0_i32 = arith.constant 0 : i32
    %c0_i32_0 = arith.constant 0 : i32
    %c0_i32_1 = arith.constant 0 : i32
    return %c0_i32, %c0_i32_0 : i32, i32
  }
  func.func @transform_5(%arg0: i32, %arg1: i32) -> (i32, i32) {
    %c0_i32 = arith.constant 0 : i32
    %c0_i32_0 = arith.constant 0 : i32
    %c0_i32_1 = arith.constant 0 : i32
    return %c0_i32, %c0_i32_0 : i32, i32
  }
  func.func @transform_6(%arg0: i32, %arg1: i32) -> (i32, i32, i32) {
    %c0_i32 = arith.constant 0 : i32
    %c0_i32_0 = arith.constant 0 : i32
    %c0_i32_1 = arith.constant 0 : i32
    %c0_i32_2 = arith.constant 0 : i32
    return %c0_i32, %c0_i32_0, %c0_i32_1 : i32, i32, i32
  }
  func.func @transform_7(%arg0: i32, %arg1: i32) -> (i32, i32, i32) {
    %c0_i32 = arith.constant 0 : i32
    %c0_i32_0 = arith.constant 0 : i32
    %c0_i32_1 = arith.constant 0 : i32
    %c0_i32_2 = arith.constant 0 : i32
    return %c0_i32, %c0_i32_0, %c0_i32_1 : i32, i32, i32
  }
  func.func @transform_8(%arg0: i32, %arg1: i32) -> (i32, i32) {
    %c0_i32 = arith.constant 0 : i32
    %c0_i32_0 = arith.constant 0 : i32
    %c0_i32_1 = arith.constant 0 : i32
    return %c0_i32, %c0_i32_0 : i32, i32
  }
  func.func @transform_9(%arg0: i32, %arg1: i32) -> (i32, i32, i32, i32) {
    %c0_i32 = arith.constant 0 : i32
    %c0_i32_0 = arith.constant 0 : i32
    %c0_i32_1 = arith.constant 0 : i32
    return %arg0, %arg1, %c0_i32, %c0_i32_0 : i32, i32, i32, i32
  }
}

</mosaic_0001>

<llo_original>
// kernel: tpu_custom_call.1
$region0: #{tpu_custom_call.1}
  #allocation0 [shape = 'u32[]', space=smem, size = 0x4, offset = 0x4, fixed_abs, tag = 'smem constant byte address 0x4 - core index']
  #allocation1 [shape = 'u32[144,128]{1,0:T(1,128)}', space=vmem, size = 0x12000, scoped, tag = 'internal scratch']
  %s0 = inlined_call_operand.vmem [shape: bf16[2,16,8,8], index: 0, kind: input, shape index: {}]
  %s1 = inlined_call_operand.vmem [shape: bf16[2,16,8,8], index: 1, kind: input, shape index: {}]
  %s2 = inlined_call_operand.vmem [shape: bf16[4,4], index: 2, kind: input, shape index: {}]
  %s3 = inlined_call_operand.vmem [shape: f32[1,4], index: 3, kind: input, shape index: {}]
  %s4 = inlined_call_operand.vmem [shape: bf16[8,8], index: 4, kind: input, shape index: {}]
  %s5 = inlined_call_operand.vmem [shape: f32[1,8], index: 5, kind: input, shape index: {}]
  %s6 = inlined_call_operand.vmem [shape: bf16[3,8,4], index: 6, kind: input, shape index: {}]
  %s7 = inlined_call_operand.vmem [shape: bf16[3,4,4], index: 7, kind: input, shape index: {}]
  %s8 = inlined_call_operand.vmem [shape: f32[1,4], index: 8, kind: input, shape index: {}]
  %s9 = inlined_call_operand.hbm [shape: f32[2,8,8,8], index: 9, kind: output, shape index: {}]
  %s10 = sld [smem:[#allocation0]]
  $region69: #{tpu_custom_call.1} parent=0
    _
  %s12 = ssub.s32 1, %s10
  %s13 = scalar_select 0, %s12, %s10
  $region1: #{tpu_custom_call.1} parent=0
    #allocation2 [shape = 'u8[32768]{0}', space=vmem, size = 0x8000, scoped, tag = 'output window, operand 0']
    #allocation3 [shape = 's32[2]{0}', space=sflag, size = 0x8, scoped, tag = 'scoped memory for tpu_custom_call.1']
    %14 = vsyncpa [#allocation3], 0
    %s15 = scalar_lea.sflag [#allocation3], 1
    %16 = vsyncpa %s15, 0
    loop: start=0, step=1, limit=6
    $region2: #{tpu_custom_call.1} parent=1 // loop_pre_header
      _
    $region3: #{tpu_custom_call.1} parent=1 // loop_header
      %s18 = sphi 0, %s22
      %p19 = scmp.ge.s32.totalorder %s18, 6
      %s25 = sphi 0, %s37
      %s26 = sphi 0, %s33
      %s27 = sphi 0, %s25
      %s28 = sphi 0, %s26
      %s29 = sphi 0, %s27
      %s30 = sphi 0, %s28
      %s42 = sphi 0, %s44
      %s45 = sphi 0, %s42
      %s46 = sphi 0, %s45
      %s62 = sphi 0, %s46
      %s78 = sphi 0, %s80
      %s81 = sphi 0, %s78
      %s82 = sphi 0, %s81
      %s98 = sphi 0, %s82
      %s102 = sphi 0, %s102
      %s104 = sphi 0, %s102
      %s105 = sphi 0, %s104
      %s119 = sphi 0, %s105
      %s123 = sphi 0, %s123
      %s125 = sphi 0, %s123
      %s126 = sphi 0, %s125
      %s140 = sphi 0, %s126
      %s144 = sphi 0, %s144
      %s146 = sphi 0, %s144
      %s147 = sphi 0, %s146
      %s161 = sphi 0, %s147
      %s165 = sphi 0, %s165
      %s167 = sphi 0, %s165
      %s168 = sphi 0, %s167
      %s182 = sphi 0, %s168
      %s186 = sphi 0, %s186
      %s188 = sphi 0, %s186
      %s189 = sphi 0, %s188
      %s203 = sphi 0, %s189
      %s207 = sphi 0, %s207
      %s209 = sphi 0, %s207
      %s210 = sphi 0, %s209
      %s224 = sphi 0, %s210
      %s228 = sphi 0, %s228
      %s230 = sphi 0, %s228
      %s231 = sphi 0, %s230
      %s245 = sphi 0, %s231
      %s253 = sphi 0, %s255
      %s256 = sphi 0, %s253
      %s257 = sphi 0, %s256
      %s273 = sphi 0, %s257
    $region4: #{tpu_custom_call.1} parent=1 // loop_header_branch
      %21 = sbr.rel (%p19) target = $region8
    $region5: #{tpu_custom_call.1} parent=1 // loop_body
      %s23 = ssub.s32 %s18, 1
      %s24 = ssub.s32 %s18, 2
      %s31 = sadd.s32 1, %s26
      %p32 = scmp.ge.s32.totalorder %s31, 2
      %s33 = scalar_select %p32, 0, %s31
      %s34 = sadd.s32 1, %s25
      %s35 = scalar_select %p32, %s34, %s25
      %p36 = scmp.ge.s32.totalorder %s35, 2
      %s37 = scalar_select %p36, 0, %s35
      %s38 = ssub.s32 %s25, %s37
      %s39 = ssub.s32 %s26, %s33
      %s40 = sor.u32 %s38, %s39
      %p41 = scmp.eq.s32.totalorder %s40, 0
      %s43 = sadd.s32 %s42, 1
      %s44 = scalar_select %p41, %s42, %s43
      %p47 = pneg %p41
      %p48 = scmp.eq.s32.totalorder %s18, 3
      %p49 = por %p47, %p48
      %p50 = scmp.ne.s32.totalorder %s42, %s45
      %p51 = scmp.eq.s32.totalorder %s18, 0
      %p52 = por %p50, %p51
      %p53 = scmp.ne.s32.totalorder %s42, %s45
      %p54 = scmp.eq.s32.totalorder %s23, 3
      %p55 = por %p53, %p54
      %p56 = scmp.ne.s32.totalorder %s45, %s46
      %p57 = scmp.eq.s32.totalorder %s23, 0
      %p58 = por %p56, %p57
      %p59 = scmp.ne.s32.totalorder %s45, %s46
      %p60 = scmp.eq.s32.totalorder %s24, 3
      %p61 = por %p59, %p60
      %p63 = scmp.ne.s32.totalorder %s46, %s62
      %p64 = scmp.eq.s32.totalorder %s24, 0
      %p65 = por %p63, %p64
      %s66 = smul.u32 %s26, 8
      %s67 = ssub.s32 %s66, 1
      %p68 = scmp.gt.s32.totalorder %s67, 0
      %s69 = scalar_select %p68, %s67, 0
      %s70 = smul.u32 %s33, 8
      %s71 = ssub.s32 %s70, 1
      %p72 = scmp.gt.s32.totalorder %s71, 0
      %s73 = scalar_select %p72, %s71, 0
      %s74 = ssub.s32 %s25, %s37
      %s75 = ssub.s32 %s69, %s73
      %s76 = sor.u32 %s74, %s75
      %p77 = scmp.eq.s32.totalorder %s76, 0
      %s79 = sadd.s32 %s78, 1
      %s80 = scalar_select %p77, %s78, %s79
      %p83 = pneg %p77
      %p84 = scmp.eq.s32.totalorder %s18, 3
      %p85 = por %p83, %p84
      %p86 = scmp.ne.s32.totalorder %s78, %s81
      %p87 = scmp.eq.s32.totalorder %s18, 0
      %p88 = por %p86, %p87
      %p89 = scmp.ne.s32.totalorder %s78, %s81
      %p90 = scmp.eq.s32.totalorder %s23, 3
      %p91 = por %p89, %p90
      %p92 = scmp.ne.s32.totalorder %s81, %s82
      %p93 = scmp.eq.s32.totalorder %s23, 0
      %p94 = por %p92, %p93
      %p95 = scmp.ne.s32.totalorder %s81, %s82
      %p96 = scmp.eq.s32.totalorder %s24, 3
      %p97 = por %p95, %p96
      %p99 = scmp.ne.s32.totalorder %s82, %s98
      %p100 = scmp.eq.s32.totalorder %s24, 0
      %p101 = por %p99, %p100
      %s103 = sadd.s32 %s102, 1
      %p106 = scmp.eq.s32.totalorder %s18, 3
      %p107 = scmp.ne.s32.totalorder %s102, %s104
      %p108 = scmp.eq.s32.totalorder %s18, 0
      %p109 = por %p107, %p108
      %p110 = scmp.ne.s32.totalorder %s102, %s104
      %p111 = scmp.eq.s32.totalorder %s23, 3
      %p112 = por %p110, %p111
      %p113 = scmp.ne.s32.totalorder %s104, %s105
      %p114 = scmp.eq.s32.totalorder %s23, 0
      %p115 = por %p113, %p114
      %p116 = scmp.ne.s32.totalorder %s104, %s105
      %p117 = scmp.eq.s32.totalorder %s24, 3
      %p118 = por %p116, %p117
      %p120 = scmp.ne.s32.totalorder %s105, %s119
      %p121 = scmp.eq.s32.totalorder %s24, 0
      %p122 = por %p120, %p121
      %s124 = sadd.s32 %s123, 1
      %p127 = scmp.eq.s32.totalorder %s18, 3
      %p128 = scmp.ne.s32.totalorder %s123, %s125
      %p129 = scmp.eq.s32.totalorder %s18, 0
      %p130 = por %p128, %p129
      %p131 = scmp.ne.s32.totalorder %s123, %s125
      %p132 = scmp.eq.s32.totalorder %s23, 3
      %p133 = por %p131, %p132
      %p134 = scmp.ne.s32.totalorder %s125, %s126
      %p135 = scmp.eq.s32.totalorder %s23, 0
      %p136 = por %p134, %p135
      %p137 = scmp.ne.s32.totalorder %s125, %s126
      %p138 = scmp.eq.s32.totalorder %s24, 3
      %p139 = por %p137, %p138
      %p141 = scmp.ne.s32.totalorder %s126, %s140
      %p142 = scmp.eq.s32.totalorder %s24, 0
      %p143 = por %p141, %p142
      %s145 = sadd.s32 %s144, 1
      %p148 = scmp.eq.s32.totalorder %s18, 3
      %p149 = scmp.ne.s32.totalorder %s144, %s146
      %p150 = scmp.eq.s32.totalorder %s18, 0
      %p151 = por %p149, %p150
      %p152 = scmp.ne.s32.totalorder %s144, %s146
      %p153 = scmp.eq.s32.totalorder %s23, 3
      %p154 = por %p152, %p153
      %p155 = scmp.ne.s32.totalorder %s146, %s147
      %p156 = scmp.eq.s32.totalorder %s23, 0
      %p157 = por %p155, %p156
      %p158 = scmp.ne.s32.totalorder %s146, %s147
      %p159 = scmp.eq.s32.totalorder %s24, 3
      %p160 = por %p158, %p159
      %p162 = scmp.ne.s32.totalorder %s147, %s161
      %p163 = scmp.eq.s32.totalorder %s24, 0
      %p164 = por %p162, %p163
      %s166 = sadd.s32 %s165, 1
      %p169 = scmp.eq.s32.totalorder %s18, 3
      %p170 = scmp.ne.s32.totalorder %s165, %s167
      %p171 = scmp.eq.s32.totalorder %s18, 0
      %p172 = por %p170, %p171
      %p173 = scmp.ne.s32.totalorder %s165, %s167
      %p174 = scmp.eq.s32.totalorder %s23, 3
      %p175 = por %p173, %p174
      %p176 = scmp.ne.s32.totalorder %s167, %s168
      %p177 = scmp.eq.s32.totalorder %s23, 0
      %p178 = por %p176, %p177
      %p179 = scmp.ne.s32.totalorder %s167, %s168
      %p180 = scmp.eq.s32.totalorder %s24, 3
      %p181 = por %p179, %p180
      %p183 = scmp.ne.s32.totalorder %s168, %s182
      %p184 = scmp.eq.s32.totalorder %s24, 0
      %p185 = por %p183, %p184
      %s187 = sadd.s32 %s186, 1
      %p190 = scmp.eq.s32.totalorder %s18, 3
      %p191 = scmp.ne.s32.totalorder %s186, %s188
      %p192 = scmp.eq.s32.totalorder %s18, 0
      %p193 = por %p191, %p192
      %p194 = scmp.ne.s32.totalorder %s186, %s188
      %p195 = scmp.eq.s32.totalorder %s23, 3
      %p196 = por %p194, %p195
      %p197 = scmp.ne.s32.totalorder %s188, %s189
      %p198 = scmp.eq.s32.totalorder %s23, 0
      %p199 = por %p197, %p198
      %p200 = scmp.ne.s32.totalorder %s188, %s189
      %p201 = scmp.eq.s32.totalorder %s24, 3
      %p202 = por %p200, %p201
      %p204 = scmp.ne.s32.totalorder %s189, %s203
      %p205 = scmp.eq.s32.totalorder %s24, 0
      %p206 = por %p204, %p205
      %s208 = sadd.s32 %s207, 1
      %p211 = scmp.eq.s32.totalorder %s18, 3
      %p212 = scmp.ne.s32.totalorder %s207, %s209
      %p213 = scmp.eq.s32.totalorder %s18, 0
      %p214 = por %p212, %p213
      %p215 = scmp.ne.s32.totalorder %s207, %s209
      %p216 = scmp.eq.s32.totalorder %s23, 3
      %p217 = por %p215, %p216
      %p218 = scmp.ne.s32.totalorder %s209, %s210
      %p219 = scmp.eq.s32.totalorder %s23, 0
      %p220 = por %p218, %p219
      %p221 = scmp.ne.s32.totalorder %s209, %s210
      %p222 = scmp.eq.s32.totalorder %s24, 3
      %p223 = por %p221, %p222
      %p225 = scmp.ne.s32.totalorder %s210, %s224
      %p226 = scmp.eq.s32.totalorder %s24, 0
      %p227 = por %p225, %p226
      %s229 = sadd.s32 %s228, 1
      %p232 = scmp.eq.s32.totalorder %s18, 3
      %p233 = scmp.ne.s32.totalorder %s228, %s230
      %p234 = scmp.eq.s32.totalorder %s18, 0
      %p235 = por %p233, %p234
      %p236 = scmp.ne.s32.totalorder %s228, %s230
      %p237 = scmp.eq.s32.totalorder %s23, 3
      %p238 = por %p236, %p237
      %p239 = scmp.ne.s32.totalorder %s230, %s231
      %p240 = scmp.eq.s32.totalorder %s23, 0
      %p241 = por %p239, %p240
      %p242 = scmp.ne.s32.totalorder %s230, %s231
      %p243 = scmp.eq.s32.totalorder %s24, 3
      %p244 = por %p242, %p243
      %p246 = scmp.ne.s32.totalorder %s231, %s245
      %p247 = scmp.eq.s32.totalorder %s24, 0
      %p248 = por %p246, %p247
      %s249 = ssub.s32 %s25, %s37
      %s250 = ssub.s32 %s26, %s33
      %s251 = sor.u32 %s249, %s250
      %p252 = scmp.eq.s32.totalorder %s251, 0
      %s254 = sadd.s32 %s253, 1
      %s255 = scalar_select %p252, %s253, %s254
      %p258 = pneg %p252
      %p259 = scmp.eq.s32.totalorder %s18, 3
      %p260 = por %p258, %p259
      %p261 = scmp.ne.s32.totalorder %s253, %s256
      %p262 = scmp.eq.s32.totalorder %s18, 0
      %p263 = por %p261, %p262
      %p264 = scmp.ne.s32.totalorder %s253, %s256
      %p265 = scmp.eq.s32.totalorder %s23, 3
      %p266 = por %p264, %p265
      %p267 = scmp.ne.s32.totalorder %s256, %s257
      %p268 = scmp.eq.s32.totalorder %s23, 0
      %p269 = por %p267, %p268
      %p270 = scmp.ne.s32.totalorder %s256, %s257
      %p271 = scmp.eq.s32.totalorder %s24, 3
      %p272 = por %p270, %p271
      %p274 = scmp.ne.s32.totalorder %s257, %s273
      %p275 = scmp.eq.s32.totalorder %s24, 0
      %p276 = por %p274, %p275
      %p277 = scmp.le.s32.totalorder 1, %s18
      %p278 = scmp.lt.s32.totalorder %s18, 5
      %p279 = pnand %p277, %p278
      %p280 = pneg %p279
      // Predicated region
      $region9: #{tpu_custom_call.1} parent=5 // pred_check
        _
      $region10: #{tpu_custom_call.1} parent=5 // pred_check_branch
        %282 = sbr.rel (%p279) target = $region12
      $region11: #{tpu_custom_call.1} parent=5 // pred_region
        %s283 = ssub.s32 %s18, 1
        // Predicated region
        $region13: #{tpu_custom_call.1} parent=11 // pred_check
          %p284 = pneg %p115
        $region14: #{tpu_custom_call.1} parent=11 // pred_check_branch
          %286 = sbr.rel (%p284) target = $region16
        $region15: #{tpu_custom_call.1} parent=11 // pred_region
          _
        $region16: #{tpu_custom_call.1} parent=11 // pred_fallthru
          _
        // Predicated region
        $region17: #{tpu_custom_call.1} parent=11 // pred_check
          %p287 = pneg %p136
        $region18: #{tpu_custom_call.1} parent=11 // pred_check_branch
          %289 = sbr.rel (%p287) target = $region20
        $region19: #{tpu_custom_call.1} parent=11 // pred_region
          _
        $region20: #{tpu_custom_call.1} parent=11 // pred_fallthru
          _
        // Predicated region
        $region21: #{tpu_custom_call.1} parent=11 // pred_check
          %p290 = pneg %p157
        $region22: #{tpu_custom_call.1} parent=11 // pred_check_branch
          %292 = sbr.rel (%p290) target = $region24
        $region23: #{tpu_custom_call.1} parent=11 // pred_region
          _
        $region24: #{tpu_custom_call.1} parent=11 // pred_fallthru
          _
        // Predicated region
        $region25: #{tpu_custom_call.1} parent=11 // pred_check
          %p293 = pneg %p178
        $region26: #{tpu_custom_call.1} parent=11 // pred_check_branch
          %295 = sbr.rel (%p293) target = $region28
        $region27: #{tpu_custom_call.1} parent=11 // pred_region
          _
        $region28: #{tpu_custom_call.1} parent=11 // pred_fallthru
          _
        // Predicated region
        $region29: #{tpu_custom_call.1} parent=11 // pred_check
          %p296 = pneg %p199
        $region30: #{tpu_custom_call.1} parent=11 // pred_check_branch
          %298 = sbr.rel (%p296) target = $region32
        $region31: #{tpu_custom_call.1} parent=11 // pred_region
          _
        $region32: #{tpu_custom_call.1} parent=11 // pred_fallthru
          _
        // Predicated region
        $region33: #{tpu_custom_call.1} parent=11 // pred_check
          %p299 = pneg %p220
        $region34: #{tpu_custom_call.1} parent=11 // pred_check_branch
          %301 = sbr.rel (%p299) target = $region36
        $region35: #{tpu_custom_call.1} parent=11 // pred_region
          _
        $region36: #{tpu_custom_call.1} parent=11 // pred_fallthru
          _
        // Predicated region
        $region37: #{tpu_custom_call.1} parent=11 // pred_check
          %p302 = pneg %p241
        $region38: #{tpu_custom_call.1} parent=11 // pred_check_branch
          %304 = sbr.rel (%p302) target = $region40
        $region39: #{tpu_custom_call.1} parent=11 // pred_region
          _
        $region40: #{tpu_custom_call.1} parent=11 // pred_fallthru
          _
      $region12: #{tpu_custom_call.1} parent=5 // pred_fallthru
        _
      %p305 = scmp.lt.s32.totalorder %s18, 4
      // Predicated region
      $region41: #{tpu_custom_call.1} parent=5 // pred_check
        %p306 = pneg %p305
      $region42: #{tpu_custom_call.1} parent=5 // pred_check_branch
        %308 = sbr.rel (%p306) target = $region44
      $region43: #{tpu_custom_call.1} parent=5 // pred_region
        // Predicated region
        $region45: #{tpu_custom_call.1} parent=43 // pred_check
          %p309 = pneg %p52
        $region46: #{tpu_custom_call.1} parent=43 // pred_check_branch
          %311 = sbr.rel (%p309) target = $region48
        $region47: #{tpu_custom_call.1} parent=43 // pred_region
          %s312 = smul.u32 8, %s26
          %p313 = scmp.lt.s32.totalorder %s25, 1
          %s314 = scalar_select %p313, %s25, 1
          %p315 = scmp.lt.s32.totalorder %s312, 15
          %s316 = scalar_select %p315, %s312, 15
          %s317 = smul.addr %s314, 16
          %s318 = sadd.s32 %s316, %s317
          %s319 = smul.addr %s318, 4
          %s320 = scalar_lea.vmem %s0, %s319
          %s321 = smul.u32 8, %s26
        $region48: #{tpu_custom_call.1} parent=43 // pred_fallthru
          _
        // Predicated region
        $region49: #{tpu_custom_call.1} parent=43 // pred_check
          %p322 = pneg %p88
        $region50: #{tpu_custom_call.1} parent=43 // pred_check_branch
          %324 = sbr.rel (%p322) target = $region52
        $region51: #{tpu_custom_call.1} parent=43 // pred_region
          %s325 = smul.u32 %s26, 8
          %s326 = ssub.s32 %s325, 1
          %p327 = scmp.gt.s32.totalorder %s326, 0
          %s328 = scalar_select %p327, %s326, 0
          %p329 = scmp.lt.s32.totalorder %s25, 1
          %s330 = scalar_select %p329, %s25, 1
          %p331 = scmp.lt.s32.totalorder %s328, 15
          %s332 = scalar_select %p331, %s328, 15
          %s333 = smul.addr %s330, 16
          %s334 = sadd.s32 %s332, %s333
          %s335 = smul.addr %s334, 4
          %s336 = scalar_lea.vmem %s1, %s335
          %s337 = smul.u32 %s26, 8
          %s338 = ssub.s32 %s337, 1
          %p339 = scmp.gt.s32.totalorder %s338, 0
          %s340 = scalar_select %p339, %s338, 0
        $region52: #{tpu_custom_call.1} parent=43 // pred_fallthru
          _
      $region44: #{tpu_custom_call.1} parent=5 // pred_fallthru
        _
      %p341 = scmp.le.s32.totalorder 1, %s18
      %p342 = scmp.lt.s32.totalorder %s18, 5
      %p343 = pnand %p341, %p342
      %p344 = pneg %p343
      // Predicated region
      $region53: #{tpu_custom_call.1} parent=5 // pred_check
        _
      $region54: #{tpu_custom_call.1} parent=5 // pred_check_branch
        %346 = sbr.rel (%p343) target = $region56
      $region55: #{tpu_custom_call.1} parent=5 // pred_region
        %s347 = ssub.s32 %s18, 1
        %s348 = smul.u32 8, %s28
        %p349 = scmp.lt.s32.totalorder %s27, 1
        %s350 = scalar_select %p349, %s27, 1
        %p351 = scmp.lt.s32.totalorder %s348, 15
        %s352 = scalar_select %p351, %s348, 15
        %s353 = smul.addr %s350, 16
        %s354 = sadd.s32 %s352, %s353
        %s355 = smul.addr %s354, 4
        %s356 = scalar_lea.vmem %s0, %s355
        %p357 = pneg %p58
        %p358 = pneg %p55
        %s359 = smul.u32 %s28, 8
        %s360 = ssub.s32 %s359, 1
        %p361 = scmp.gt.s32.totalorder %s360, 0
        %s362 = scalar_select %p361, %s360, 0
        %p363 = scmp.lt.s32.totalorder %s27, 1
        %s364 = scalar_select %p363, %s27, 1
        %p365 = scmp.lt.s32.totalorder %s362, 15
        %s366 = scalar_select %p365, %s362, 15
        %s367 = smul.addr %s364, 16
        %s368 = sadd.s32 %s366, %s367
        %s369 = smul.addr %s368, 4
        %s370 = scalar_lea.vmem %s1, %s369
        %p371 = pneg %p94
        %p372 = pneg %p91
        %p373 = pneg %p115
        %p374 = pneg %p112
        %p375 = pneg %p136
        %p376 = pneg %p133
        %p377 = pneg %p157
        %p378 = pneg %p154
        %p379 = pneg %p178
        %p380 = pneg %p175
        %p381 = pneg %p199
        %p382 = pneg %p196
        %p383 = pneg %p220
        %p384 = pneg %p217
        %p385 = pneg %p241
        %p386 = pneg %p238
        %p387 = pneg %p269
        %p388 = pneg %p266
        %s389 = sand.u32 %s256, 1
        %s390 = scalar_lea.sflag [#allocation3], %s389
        %s391 = sand.u32 %s256, 1
        %s392 = smul.addr %s391, 32
        %s393 = scalar_lea.vmem [#allocation2], %s392
        %s394 = smul.u32 8, %s28
        %p395 = scmp.lt.s32.totalorder %s27, 1
        %s396 = scalar_select %p395, %s27, 1
        %p397 = scmp.lt.s32.totalorder %s394, 15
        %s398 = scalar_select %p397, %s394, 15
        %s399 = smul.addr %s396, 16
        %s400 = sadd.s32 %s398, %s399
        %s401 = smul.addr %s400, 4
        %s402 = scalar_lea.vmem %s0, %s401
        %s403 = smul.u32 8, %s28
        %s404 = smul.u32 %s28, 8
        %s405 = ssub.s32 %s404, 1
        %p406 = scmp.gt.s32.totalorder %s405, 0
        %s407 = scalar_select %p406, %s405, 0
        %p408 = scmp.lt.s32.totalorder %s27, 1
        %s409 = scalar_select %p408, %s27, 1
        %p410 = scmp.lt.s32.totalorder %s407, 15
        %s411 = scalar_select %p410, %s407, 15
        %s412 = smul.addr %s409, 16
        %s413 = sadd.s32 %s411, %s412
        %s414 = smul.addr %s413, 4
        %s415 = scalar_lea.vmem %s1, %s414
        %s416 = smul.u32 %s28, 8
        %s417 = ssub.s32 %s416, 1
        %p418 = scmp.gt.s32.totalorder %s417, 0
        %s419 = scalar_select %p418, %s417, 0
        %s420 = smul.u32 4, %s28
        %v422 = vld [vmem:[%s402] sm:$0xf]
        %v423 = vld [vmem:[%s402 + $0x4] sm:$0xf]
        %v424 = vld [vmem:[%s402 + $0x8] sm:$0xf]
        %v425 = vld [vmem:[%s402 + $0xc] sm:$0xf]
        %v426 = vld [vmem:[%s402 + $0x10] sm:$0xf]
        %v427 = vld [vmem:[%s402 + $0x14] sm:$0xf]
        %v428 = vld [vmem:[%s402 + $0x18] sm:$0xf]
        %v429 = vld [vmem:[%s402 + $0x1c] sm:$0xf]
        %v430 = vld [vmem:[%s4] sm:$0xf]
        %v431 = vld [vmem:[%s5] sm:$0x1]
        %v433 = vlaneseq
        %v434 = vshrl.u32 %v433, 7
        %v435 = vsub.s32 0, %v434
        %v436 = vrot.slane %v431, %v435
        %v446 = vunpack.c.l.b16 %v422
        %v447 = vunpack.c.l.b16 %v423
        %v448 = vunpack.c.l.b16 %v424
        %v449 = vunpack.c.l.b16 %v425
        %v450 = vunpack.c.l.b16 %v426
        %v451 = vunpack.c.l.b16 %v427
        %v452 = vunpack.c.l.b16 %v428
        %v453 = vunpack.c.l.b16 %v429
        %v454 = vpack.c.b16 %v447, %v446
        %v455 = vpack.c.b16 %v449, %v448
        %v456 = vpack.c.b16 %v451, %v450
        %v457 = vpack.c.b16 %v453, %v452
        %vm458 = vcmask 64512
        %v460 = vsel %vm458, %v454, 0
        %v463 = vsel %vm458, %v455, 0
        %v466 = vsel %vm458, %v456, 0
        %v469 = vsel %vm458, %v457, 0
        %vm471 = vcmask 1043456
        %v473 = vsel %vm471, %v430, 0
        %475 = vmatprep.subr.bf16.mxu0 0
        %476 = vmatpush1.bf16.msra.mxu0 %v473
        %477 = vmatprep.subr.bf16.mxu0 0
        %478 = vmatpush1.bf16.msra.mxu0 0
        %479 = vmatprep.subr.bf16.mxu0 0
        %480 = vmatpush1.bf16.msra.mxu0 0
        %481 = vmatprep.subr.bf16.mxu0 0
        %482 = vmatpush1.bf16.msra.mxu0 0
        %483 = vmatprep.subr.bf16.mxu0 0
        %484 = vmatpush1.bf16.msra.mxu0 0
        %485 = vmatprep.subr.bf16.mxu0 0
        %486 = vmatpush1.bf16.msra.mxu0 0
        %487 = vmatprep.subr.bf16.mxu0 0
        %488 = vmatpush1.bf16.msra.mxu0 0
        %489 = vmatprep.subr.bf16.mxu0 0
        %490 = vmatpush1.bf16.msra.mxu0 0
        %491 = vmatprep.subr.bf16.mxu0 0
        %492 = vmatpush1.bf16.msra.mxu0 0
        %493 = vmatprep.subr.bf16.mxu0 0
        %494 = vmatpush1.bf16.msra.mxu0 0
        %495 = vmatprep.subr.bf16.mxu0 0
        %496 = vmatpush1.bf16.msra.mxu0 0
        %497 = vmatprep.subr.bf16.mxu0 0
        %498 = vmatpush1.bf16.msra.mxu0 0
        %499 = vmatprep.subr.bf16.mxu0 0
        %500 = vmatpush1.bf16.msra.mxu0 0
        %501 = vmatprep.subr.bf16.mxu0 0
        %502 = vmatpush1.bf16.msra.mxu0 0
        %503 = vmatprep.subr.bf16.mxu0 0
        %504 = vmatpush1.bf16.msra.mxu0 0
        %505 = vmatprep.subr.bf16.mxu0 0
        %506 = vmatpush1.bf16.msra.mxu0 0
        %507 = vmatprep.mubr.bf16.mxu0 0
        %508 = vmatmul.mubr.bf16.gmra.mrb[0].mxu0 %v460
        %v509 = vpop.f32.mrb[0].mxu0
        %v510 = vadd.f32 %v436, %v509
        %v511 = vpop.f32.mrb[0].mxu0
        %v512 = vpop.f32.mrb[0].mxu0
        %v513 = vadd.f32 %v436, %v512
        %v514 = vpop.f32.mrb[0].mxu0
        %515 = vmatprep.mubr.bf16.mxu0 0
        %516 = vmatmul.mubr.bf16.gmra.mrb[0].mxu0 %v463
        %v517 = vpop.f32.mrb[0].mxu0
        %v518 = vadd.f32 %v436, %v517
        %v519 = vpop.f32.mrb[0].mxu0
        %v520 = vpop.f32.mrb[0].mxu0
        %v521 = vadd.f32 %v436, %v520
        %v522 = vpop.f32.mrb[0].mxu0
        %523 = vmatprep.mubr.bf16.mxu0 0
        %524 = vmatmul.mubr.bf16.gmra.mrb[0].mxu0 %v466
        %v525 = vpop.f32.mrb[0].mxu0
        %v526 = vadd.f32 %v436, %v525
        %v527 = vpop.f32.mrb[0].mxu0
        %v528 = vpop.f32.mrb[0].mxu0
        %v529 = vadd.f32 %v436, %v528
        %v530 = vpop.f32.mrb[0].mxu0
        %531 = vmatprep.mubr.bf16.mxu0 0
        %532 = vmatmul.mubr.bf16.gmra.mrb[0].mxu0 %v469
        %v533 = vpop.f32.mrb[0].mxu0
        %v534 = vadd.f32 %v436, %v533
        %v535 = vpop.f32.mrb[0].mxu0
        %v536 = vpop.f32.mrb[0].mxu0
        %v537 = vadd.f32 %v436, %v536
        %v538 = vpop.f32.mrb[0].mxu0
        %539 = vdwg.mxu0
        %v540 = vsub.f32 0.0, %v510
        %v541 = vsub.f32 0.0, %v513
        %v542 = vsub.f32 0.0, %v518
        %v543 = vsub.f32 0.0, %v521
        %v544 = vsub.f32 0.0, %v526
        %v545 = vsub.f32 0.0, %v529
        %v546 = vsub.f32 0.0, %v534
        %v547 = vsub.f32 0.0, %v537
        %v548 = vmul.f32 %v540, 1.442695
        %v549 = vpow.pop %v548
        %v550 = vmul.f32 %v541, 1.442695
        %v551 = vpow.pop %v550
        %v552 = vmul.f32 %v542, 1.442695
        %v553 = vpow.pop %v552
        %v554 = vmul.f32 %v543, 1.442695
        %v555 = vpow.pop %v554
        %v556 = vmul.f32 %v544, 1.442695
        %v557 = vpow.pop %v556
        %v558 = vmul.f32 %v545, 1.442695
        %v559 = vpow.pop %v558
        %v560 = vmul.f32 %v546, 1.442695
        %v561 = vpow.pop %v560
        %v562 = vmul.f32 %v547, 1.442695
        %v563 = vpow.pop %v562
        %v564 = vadd.f32 %v549, 1.0
        %v565 = vadd.f32 %v551, 1.0
        %v566 = vadd.f32 %v553, 1.0
        %v567 = vadd.f32 %v555, 1.0
        %v568 = vadd.f32 %v557, 1.0
        %v569 = vadd.f32 %v559, 1.0
        %v570 = vadd.f32 %v561, 1.0
        %v571 = vadd.f32 %v563, 1.0
        %v572 = vrcp.pop %v564
        %v573 = vrcp.pop %v565
        %v574 = vrcp.pop %v566
        %v575 = vrcp.pop %v567
        %v576 = vrcp.pop %v568
        %v577 = vrcp.pop %v569
        %v578 = vrcp.pop %v570
        %v579 = vrcp.pop %v571
        %v580 = vmul.f32 %v510, %v572
        %v581 = vmul.f32 %v513, %v573
        %v582 = vmul.f32 %v518, %v574
        %v583 = vmul.f32 %v521, %v575
        %v584 = vmul.f32 %v526, %v576
        %v585 = vmul.f32 %v529, %v577
        %v586 = vmul.f32 %v534, %v578
        %v587 = vmul.f32 %v537, %v579
        %v588 = vpack.c.bf16 %v581, %v580
        %v589 = vpack.c.bf16 %v583, %v582
        %v590 = vpack.c.bf16 %v585, %v584
        %v591 = vpack.c.bf16 %v587, %v586
        %v596 = vunpack.c.l.b16 %v588
        %v597 = vunpack.c.h.b16 %v588
        %v598 = vunpack.c.l.b16 %v589
        %v599 = vunpack.c.h.b16 %v589
        %v600 = vunpack.c.l.b16 %v590
        %v601 = vunpack.c.h.b16 %v590
        %v602 = vunpack.c.l.b16 %v591
        %v603 = vunpack.c.h.b16 %v591
        %v604 = vld [vmem:[%s415] sm:$0xf]
        %v606 = vsel %vm458, %v604, 0
        %608 = vmatprep.subr.bf16.mxu0 0
        %609 = vmatpush1.bf16.msra.mxu0 %v473
        %610 = vmatprep.subr.bf16.mxu0 0
        %611 = vmatpush1.bf16.msra.mxu0 0
        %612 = vmatprep.subr.bf16.mxu0 0
        %613 = vmatpush1.bf16.msra.mxu0 0
        %614 = vmatprep.subr.bf16.mxu0 0
        %615 = vmatpush1.bf16.msra.mxu0 0
        %616 = vmatprep.subr.bf16.mxu0 0
        %617 = vmatpush1.bf16.msra.mxu0 0
        %618 = vmatprep.subr.bf16.mxu0 0
        %619 = vmatpush1.bf16.msra.mxu0 0
        %620 = vmatprep.subr.bf16.mxu0 0
        %621 = vmatpush1.bf16.msra.mxu0 0
        %622 = vmatprep.subr.bf16.mxu0 0
        %623 = vmatpush1.bf16.msra.mxu0 0
        %624 = vmatprep.subr.bf16.mxu0 0
        %625 = vmatpush1.bf16.msra.mxu0 0
        %626 = vmatprep.subr.bf16.mxu0 0
        %627 = vmatpush1.bf16.msra.mxu0 0
        %628 = vmatprep.subr.bf16.mxu0 0
        %629 = vmatpush1.bf16.msra.mxu0 0
        %630 = vmatprep.subr.bf16.mxu0 0
        %631 = vmatpush1.bf16.msra.mxu0 0
        %632 = vmatprep.subr.bf16.mxu0 0
        %633 = vmatpush1.bf16.msra.mxu0 0
        %634 = vmatprep.subr.bf16.mxu0 0
        %635 = vmatpush1.bf16.msra.mxu0 0
        %636 = vmatprep.subr.bf16.mxu0 0
        %637 = vmatpush1.bf16.msra.mxu0 0
        %638 = vmatprep.subr.bf16.mxu0 0
        %639 = vmatpush1.bf16.msra.mxu0 0
        %640 = vmatprep.mubr.bf16.mxu0 0
        %641 = vmatmul.mubr.bf16.gmra.mrb[0].mxu0 %v606
        %v642 = vpop.f32.mrb[0].mxu0
        %v643 = vadd.f32 %v436, %v642
        %v644 = vpop.f32.mrb[0].mxu0
        %v645 = vpop.f32.mrb[0].mxu0
        %v646 = vpop.f32.mrb[0].mxu0
        %647 = vdwg.mxu0
        %v648 = vsub.f32 0.0, %v643
        %v649 = vmul.f32 %v648, 1.442695
        %v650 = vpow.pop %v649
        %v651 = vadd.f32 %v650, 1.0
        %v652 = vrcp.pop %v651
        %v653 = vmul.f32 %v643, %v652
        %p654 = scmp.eq.s32.totalorder %s28, 0
        %s655 = scalar_select %p654, 1, 0
        %v656 = vstv %s655
        %vm657 = vcmp.eq.s32.totalorder %v656, 1
        %v658 = vsel %vm657, 0.0, %v653
        %v659 = vpack.c.bf16 %v658, %v658
        %v660 = vld [vmem:[%s8] sm:$0x1]
        %v662 = vlaneseq
        %v663 = vshrl.u32 %v662, 7
        %v664 = vsub.s32 0, %v663
        %v665 = vrot.slane %v660, %v664
        %v667 = vld [vmem:[%s6] sm:$0xf]
        %v669 = vunpack.c.l.b16 %v659
        %v670 = vpack.c.b16 %v597, %v669
        %v671 = vpack.c.b16 %v601, %v599
        %v673 = vsel %vm458, %v670, 0
        %v676 = vsel %vm458, %v671, 0
        %v679 = vsel %vm471, %v667, 0
        %681 = vmatprep.subr.bf16.mxu0 0
        %682 = vmatpush1.bf16.msra.mxu0 %v679
        %683 = vmatprep.subr.bf16.mxu0 0
        %684 = vmatpush1.bf16.msra.mxu0 0
        %685 = vmatprep.subr.bf16.mxu0 0
        %686 = vmatpush1.bf16.msra.mxu0 0
        %687 = vmatprep.subr.bf16.mxu0 0
        %688 = vmatpush1.bf16.msra.mxu0 0
        %689 = vmatprep.subr.bf16.mxu0 0
        %690 = vmatpush1.bf16.msra.mxu0 0
        %691 = vmatprep.subr.bf16.mxu0 0
        %692 = vmatpush1.bf16.msra.mxu0 0
        %693 = vmatprep.subr.bf16.mxu0 0
        %694 = vmatpush1.bf16.msra.mxu0 0
        %695 = vmatprep.subr.bf16.mxu0 0
        %696 = vmatpush1.bf16.msra.mxu0 0
        %697 = vmatprep.subr.bf16.mxu0 0
        %698 = vmatpush1.bf16.msra.mxu0 0
        %699 = vmatprep.subr.bf16.mxu0 0
        %700 = vmatpush1.bf16.msra.mxu0 0
        %701 = vmatprep.subr.bf16.mxu0 0
        %702 = vmatpush1.bf16.msra.mxu0 0
        %703 = vmatprep.subr.bf16.mxu0 0
        %704 = vmatpush1.bf16.msra.mxu0 0
        %705 = vmatprep.subr.bf16.mxu0 0
        %706 = vmatpush1.bf16.msra.mxu0 0
        %707 = vmatprep.subr.bf16.mxu0 0
        %708 = vmatpush1.bf16.msra.mxu0 0
        %709 = vmatprep.subr.bf16.mxu0 0
        %710 = vmatpush1.bf16.msra.mxu0 0
        %711 = vmatprep.subr.bf16.mxu0 0
        %712 = vmatpush1.bf16.msra.mxu0 0
        %713 = vmatprep.mubr.bf16.mxu0 0
        %714 = vmatmul.mubr.bf16.gmra.mrb[0].mxu0 %v673
        %v715 = vpop.f32.mrb[0].mxu0
        %v716 = vadd.f32 0.0, %v715
        %v717 = vpop.f32.mrb[0].mxu0
        %v718 = vpop.f32.mrb[0].mxu0
        %v719 = vadd.f32 0.0, %v718
        %v720 = vpop.f32.mrb[0].mxu0
        %721 = vmatprep.mubr.bf16.mxu0 0
        %722 = vmatmul.mubr.bf16.gmra.mrb[0].mxu0 %v676
        %v723 = vpop.f32.mrb[0].mxu0
        %v724 = vadd.f32 0.0, %v723
        %v725 = vpop.f32.mrb[0].mxu0
        %v726 = vpop.f32.mrb[0].mxu0
        %v727 = vadd.f32 0.0, %v726
        %v728 = vpop.f32.mrb[0].mxu0
        %729 = vdwg.mxu0
        %v730 = vadd.f32 %v665, %v716
        %v731 = vadd.f32 %v665, %v719
        %v732 = vadd.f32 %v665, %v724
        %v733 = vadd.f32 %v665, %v727
        %v734 = vld [vmem:[%s7] sm:$0x3]
        %s735 = scalar_lea.vmem %s6, 4
        %v736 = vld [vmem:[%s735] sm:$0xf]
        %v737 = vpack.c.b16 %v598, %v596
        %v738 = vpack.c.b16 %v602, %v600
        %v740 = vsel %vm458, %v737, 0
        %v743 = vsel %vm458, %v738, 0
        %v746 = vsel %vm471, %v736, 0
        %748 = vmatprep.subr.bf16.mxu0 0
        %749 = vmatpush1.bf16.msra.mxu0 %v746
        %750 = vmatprep.subr.bf16.mxu0 0
        %751 = vmatpush1.bf16.msra.mxu0 0
        %752 = vmatprep.subr.bf16.mxu0 0
        %753 = vmatpush1.bf16.msra.mxu0 0
        %754 = vmatprep.subr.bf16.mxu0 0
        %755 = vmatpush1.bf16.msra.mxu0 0
        %756 = vmatprep.subr.bf16.mxu0 0
        %757 = vmatpush1.bf16.msra.mxu0 0
        %758 = vmatprep.subr.bf16.mxu0 0
        %759 = vmatpush1.bf16.msra.mxu0 0
        %760 = vmatprep.subr.bf16.mxu0 0
        %761 = vmatpush1.bf16.msra.mxu0 0
        %762 = vmatprep.subr.bf16.mxu0 0
        %763 = vmatpush1.bf16.msra.mxu0 0
        %764 = vmatprep.subr.bf16.mxu0 0
        %765 = vmatpush1.bf16.msra.mxu0 0
        %766 = vmatprep.subr.bf16.mxu0 0
        %767 = vmatpush1.bf16.msra.mxu0 0
        %768 = vmatprep.subr.bf16.mxu0 0
        %769 = vmatpush1.bf16.msra.mxu0 0
        %770 = vmatprep.subr.bf16.mxu0 0
        %771 = vmatpush1.bf16.msra.mxu0 0
        %772 = vmatprep.subr.bf16.mxu0 0
        %773 = vmatpush1.bf16.msra.mxu0 0
        %774 = vmatprep.subr.bf16.mxu0 0
        %775 = vmatpush1.bf16.msra.mxu0 0
        %776 = vmatprep.subr.bf16.mxu0 0
        %777 = vmatpush1.bf16.msra.mxu0 0
        %778 = vmatprep.subr.bf16.mxu0 0
        %779 = vmatpush1.bf16.msra.mxu0 0
        %780 = vmatprep.mubr.bf16.mxu0 0
        %781 = vmatmul.mubr.bf16.gmra.mrb[0].mxu0 %v740
        %v782 = vpop.f32.mrb[0].mxu0
        %v783 = vadd.f32 0.0, %v782
        %v784 = vpop.f32.mrb[0].mxu0
        %v785 = vpop.f32.mrb[0].mxu0
        %v786 = vadd.f32 0.0, %v785
        %v787 = vpop.f32.mrb[0].mxu0
        %788 = vmatprep.mubr.bf16.mxu0 0
        %789 = vmatmul.mubr.bf16.gmra.mrb[0].mxu0 %v743
        %v790 = vpop.f32.mrb[0].mxu0
        %v791 = vadd.f32 0.0, %v790
        %v792 = vpop.f32.mrb[0].mxu0
        %v793 = vpop.f32.mrb[0].mxu0
        %v794 = vadd.f32 0.0, %v793
        %v795 = vpop.f32.mrb[0].mxu0
        %796 = vdwg.mxu0
        %v797 = vadd.f32 %v730, %v783
        %v798 = vadd.f32 %v731, %v786
        %v799 = vadd.f32 %v732, %v791
        %v800 = vadd.f32 %v733, %v794
        %s801 = scalar_lea.vmem %s7, 2
        %v802 = vld [vmem:[%s801] sm:$0x3]
        %803 = vrot.lane.b32.xlu0 %v737, 124
        %v804 = vpop.permute.xlu0 %803
        %805 = vrot.lane.b32.xlu0 %v738, 124
        %v806 = vpop.permute.xlu0 %805
        %vm807 = vcmask 31744
        %v809 = vsel %vm807, %v804, 0
        %v812 = vsel %vm807, %v806, 0
        %vm814 = vcmask 1041408
        %v816 = vsel %vm814, %v802, 0
        %818 = vmatprep.subr.bf16.mxu0 0
        %819 = vmatpush1.bf16.msra.mxu0 %v816
        %820 = vmatprep.subr.bf16.mxu0 0
        %821 = vmatpush1.bf16.msra.mxu0 0
        %822 = vmatprep.subr.bf16.mxu0 0
        %823 = vmatpush1.bf16.msra.mxu0 0
        %824 = vmatprep.subr.bf16.mxu0 0
        %825 = vmatpush1.bf16.msra.mxu0 0
        %826 = vmatprep.subr.bf16.mxu0 0
        %827 = vmatpush1.bf16.msra.mxu0 0
        %828 = vmatprep.subr.bf16.mxu0 0
        %829 = vmatpush1.bf16.msra.mxu0 0
        %830 = vmatprep.subr.bf16.mxu0 0
        %831 = vmatpush1.bf16.msra.mxu0 0
        %832 = vmatprep.subr.bf16.mxu0 0
        %833 = vmatpush1.bf16.msra.mxu0 0
        %834 = vmatprep.subr.bf16.mxu0 0
        %835 = vmatpush1.bf16.msra.mxu0 0
        %836 = vmatprep.subr.bf16.mxu0 0
        %837 = vmatpush1.bf16.msra.mxu0 0
        %838 = vmatprep.subr.bf16.mxu0 0
        %839 = vmatpush1.bf16.msra.mxu0 0
        %840 = vmatprep.subr.bf16.mxu0 0
        %841 = vmatpush1.bf16.msra.mxu0 0
        %842 = vmatprep.subr.bf16.mxu0 0
        %843 = vmatpush1.bf16.msra.mxu0 0
        %844 = vmatprep.subr.bf16.mxu0 0
        %845 = vmatpush1.bf16.msra.mxu0 0
        %846 = vmatprep.subr.bf16.mxu0 0
        %847 = vmatpush1.bf16.msra.mxu0 0
        %848 = vmatprep.subr.bf16.mxu0 0
        %849 = vmatpush1.bf16.msra.mxu0 0
        %850 = vmatprep.mubr.bf16.mxu0 0
        %851 = vmatmul.mubr.bf16.gmra.mrb[0].mxu0 %v809
        %v852 = vpop.f32.mrb[0].mxu0
        %v853 = vadd.f32 0.0, %v852
        %v854 = vpop.f32.mrb[0].mxu0
        %v855 = vpop.f32.mrb[0].mxu0
        %v856 = vadd.f32 0.0, %v855
        %v857 = vpop.f32.mrb[0].mxu0
        %858 = vmatprep.mubr.bf16.mxu0 0
        %859 = vmatmul.mubr.bf16.gmra.mrb[0].mxu0 %v812
        %v860 = vpop.f32.mrb[0].mxu0
        %v861 = vadd.f32 0.0, %v860
        %v862 = vpop.f32.mrb[0].mxu0
        %v863 = vpop.f32.mrb[0].mxu0
        %v864 = vadd.f32 0.0, %v863
        %v865 = vpop.f32.mrb[0].mxu0
        %866 = vdwg.mxu0
        %867 = vrot.lane.b32.xlu0 %v670, 124
        %v868 = vpop.permute.xlu0 %867
        %869 = vrot.lane.b32.xlu0 %v671, 124
        %v870 = vpop.permute.xlu0 %869
        %v872 = vsel %vm807, %v868, 0
        %v875 = vsel %vm807, %v870, 0
        %v878 = vsel %vm814, %v734, 0
        %880 = vmatprep.subr.bf16.mxu0 0
        %881 = vmatpush1.bf16.msra.mxu0 %v878
        %882 = vmatprep.subr.bf16.mxu0 0
        %883 = vmatpush1.bf16.msra.mxu0 0
        %884 = vmatprep.subr.bf16.mxu0 0
        %885 = vmatpush1.bf16.msra.mxu0 0
        %886 = vmatprep.subr.bf16.mxu0 0
        %887 = vmatpush1.bf16.msra.mxu0 0
        %888 = vmatprep.subr.bf16.mxu0 0
        %889 = vmatpush1.bf16.msra.mxu0 0
        %890 = vmatprep.subr.bf16.mxu0 0
        %891 = vmatpush1.bf16.msra.mxu0 0
        %892 = vmatprep.subr.bf16.mxu0 0
        %893 = vmatpush1.bf16.msra.mxu0 0
        %894 = vmatprep.subr.bf16.mxu0 0
        %895 = vmatpush1.bf16.msra.mxu0 0
        %896 = vmatprep.subr.bf16.mxu0 0
        %897 = vmatpush1.bf16.msra.mxu0 0
        %898 = vmatprep.subr.bf16.mxu0 0
        %899 = vmatpush1.bf16.msra.mxu0 0
        %900 = vmatprep.subr.bf16.mxu0 0
        %901 = vmatpush1.bf16.msra.mxu0 0
        %902 = vmatprep.subr.bf16.mxu0 0
        %903 = vmatpush1.bf16.msra.mxu0 0
        %904 = vmatprep.subr.bf16.mxu0 0
        %905 = vmatpush1.bf16.msra.mxu0 0
        %906 = vmatprep.subr.bf16.mxu0 0
        %907 = vmatpush1.bf16.msra.mxu0 0
        %908 = vmatprep.subr.bf16.mxu0 0
        %909 = vmatpush1.bf16.msra.mxu0 0
        %910 = vmatprep.subr.bf16.mxu0 0
        %911 = vmatpush1.bf16.msra.mxu0 0
        %912 = vmatprep.mubr.bf16.mxu0 0
        %913 = vmatmul.mubr.bf16.gmra.mrb[0].mxu0 %v872
        %v914 = vpop.f32.mrb[0].mxu0
        %v915 = vadd.f32 %v853, %v914
        %v916 = vpop.f32.mrb[0].mxu0
        %v917 = vpop.f32.mrb[0].mxu0
        %v918 = vadd.f32 %v856, %v917
        %v919 = vpop.f32.mrb[0].mxu0
        %920 = vmatprep.mubr.bf16.mxu0 0
        %921 = vmatmul.mubr.bf16.gmra.mrb[0].mxu0 %v875
        %v922 = vpop.f32.mrb[0].mxu0
        %v923 = vadd.f32 %v861, %v922
        %v924 = vpop.f32.mrb[0].mxu0
        %v925 = vpop.f32.mrb[0].mxu0
        %v926 = vadd.f32 %v864, %v925
        %v927 = vpop.f32.mrb[0].mxu0
        %928 = vdwg.mxu0
        %s929 = scalar_lea.vmem %s6, 8
        %v930 = vld [vmem:[%s929] sm:$0xf]
        %v931 = vpack.c.b16 %v599, %v597
        %v932 = vpack.c.b16 %v603, %v601
        %v934 = vsel %vm458, %v931, 0
        %v937 = vsel %vm458, %v932, 0
        %v940 = vsel %vm471, %v930, 0
        %942 = vmatprep.subr.bf16.mxu0 0
        %943 = vmatpush1.bf16.msra.mxu0 %v940
        %944 = vmatprep.subr.bf16.mxu0 0
        %945 = vmatpush1.bf16.msra.mxu0 0
        %946 = vmatprep.subr.bf16.mxu0 0
        %947 = vmatpush1.bf16.msra.mxu0 0
        %948 = vmatprep.subr.bf16.mxu0 0
        %949 = vmatpush1.bf16.msra.mxu0 0
        %950 = vmatprep.subr.bf16.mxu0 0
        %951 = vmatpush1.bf16.msra.mxu0 0
        %952 = vmatprep.subr.bf16.mxu0 0
        %953 = vmatpush1.bf16.msra.mxu0 0
        %954 = vmatprep.subr.bf16.mxu0 0
        %955 = vmatpush1.bf16.msra.mxu0 0
        %956 = vmatprep.subr.bf16.mxu0 0
        %957 = vmatpush1.bf16.msra.mxu0 0
        %958 = vmatprep.subr.bf16.mxu0 0
        %959 = vmatpush1.bf16.msra.mxu0 0
        %960 = vmatprep.subr.bf16.mxu0 0
        %961 = vmatpush1.bf16.msra.mxu0 0
        %962 = vmatprep.subr.bf16.mxu0 0
        %963 = vmatpush1.bf16.msra.mxu0 0
        %964 = vmatprep.subr.bf16.mxu0 0
        %965 = vmatpush1.bf16.msra.mxu0 0
        %966 = vmatprep.subr.bf16.mxu0 0
        %967 = vmatpush1.bf16.msra.mxu0 0
        %968 = vmatprep.subr.bf16.mxu0 0
        %969 = vmatpush1.bf16.msra.mxu0 0
        %970 = vmatprep.subr.bf16.mxu0 0
        %971 = vmatpush1.bf16.msra.mxu0 0
        %972 = vmatprep.subr.bf16.mxu0 0
        %973 = vmatpush1.bf16.msra.mxu0 0
        %974 = vmatprep.mubr.bf16.mxu0 0
        %975 = vmatmul.mubr.bf16.gmra.mrb[0].mxu0 %v934
        %v976 = vpop.f32.mrb[0].mxu0
        %v977 = vadd.f32 0.0, %v976
        %v978 = vpop.f32.mrb[0].mxu0
        %v979 = vpop.f32.mrb[0].mxu0
        %v980 = vadd.f32 0.0, %v979
        %v981 = vpop.f32.mrb[0].mxu0
        %982 = vmatprep.mubr.bf16.mxu0 0
        %983 = vmatmul.mubr.bf16.gmra.mrb[0].mxu0 %v937
        %v984 = vpop.f32.mrb[0].mxu0
        %v985 = vadd.f32 0.0, %v984
        %v986 = vpop.f32.mrb[0].mxu0
        %v987 = vpop.f32.mrb[0].mxu0
        %v988 = vadd.f32 0.0, %v987
        %v989 = vpop.f32.mrb[0].mxu0
        %990 = vdwg.mxu0
        %v991 = vadd.f32 %v797, %v977
        %v992 = vadd.f32 %v798, %v980
        %v993 = vadd.f32 %v799, %v985
        %v994 = vadd.f32 %v800, %v988
        %s995 = scalar_lea.vmem %s7, 4
        %v996 = vld [vmem:[%s995] sm:$0x3]
        %997 = vrot.lane.b32.xlu0 %v931, 124
        %v998 = vpop.permute.xlu0 %997
        %999 = vrot.lane.b32.xlu0 %v932, 124
        %v1000 = vpop.permute.xlu0 %999
        %v1002 = vsel %vm807, %v998, 0
        %v1005 = vsel %vm807, %v1000, 0
        %v1008 = vsel %vm814, %v996, 0
        %1010 = vmatprep.subr.bf16.mxu0 0
        %1011 = vmatpush1.bf16.msra.mxu0 %v1008
        %1012 = vmatprep.subr.bf16.mxu0 0
        %1013 = vmatpush1.bf16.msra.mxu0 0
        %1014 = vmatprep.subr.bf16.mxu0 0
        %1015 = vmatpush1.bf16.msra.mxu0 0
        %1016 = vmatprep.subr.bf16.mxu0 0
        %1017 = vmatpush1.bf16.msra.mxu0 0
        %1018 = vmatprep.subr.bf16.mxu0 0
        %1019 = vmatpush1.bf16.msra.mxu0 0
        %1020 = vmatprep.subr.bf16.mxu0 0
        %1021 = vmatpush1.bf16.msra.mxu0 0
        %1022 = vmatprep.subr.bf16.mxu0 0
        %1023 = vmatpush1.bf16.msra.mxu0 0
        %1024 = vmatprep.subr.bf16.mxu0 0
        %1025 = vmatpush1.bf16.msra.mxu0 0
        %1026 = vmatprep.subr.bf16.mxu0 0
        %1027 = vmatpush1.bf16.msra.mxu0 0
        %1028 = vmatprep.subr.bf16.mxu0 0
        %1029 = vmatpush1.bf16.msra.mxu0 0
        %1030 = vmatprep.subr.bf16.mxu0 0
        %1031 = vmatpush1.bf16.msra.mxu0 0
        %1032 = vmatprep.subr.bf16.mxu0 0
        %1033 = vmatpush1.bf16.msra.mxu0 0
        %1034 = vmatprep.subr.bf16.mxu0 0
        %1035 = vmatpush1.bf16.msra.mxu0 0
        %1036 = vmatprep.subr.bf16.mxu0 0
        %1037 = vmatpush1.bf16.msra.mxu0 0
        %1038 = vmatprep.subr.bf16.mxu0 0
        %1039 = vmatpush1.bf16.msra.mxu0 0
        %1040 = vmatprep.subr.bf16.mxu0 0
        %1041 = vmatpush1.bf16.msra.mxu0 0
        %1042 = vmatprep.mubr.bf16.mxu0 0
        %1043 = vmatmul.mubr.bf16.gmra.mrb[0].mxu0 %v1002
        %v1044 = vpop.f32.mrb[0].mxu0
        %v1045 = vadd.f32 0.0, %v1044
        %v1046 = vpop.f32.mrb[0].mxu0
        %v1047 = vpop.f32.mrb[0].mxu0
        %v1048 = vadd.f32 0.0, %v1047
        %v1049 = vpop.f32.mrb[0].mxu0
        %1050 = vmatprep.mubr.bf16.mxu0 0
        %1051 = vmatmul.mubr.bf16.gmra.mrb[0].mxu0 %v1005
        %v1052 = vpop.f32.mrb[0].mxu0
        %v1053 = vadd.f32 0.0, %v1052
        %v1054 = vpop.f32.mrb[0].mxu0
        %v1055 = vpop.f32.mrb[0].mxu0
        %v1056 = vadd.f32 0.0, %v1055
        %v1057 = vpop.f32.mrb[0].mxu0
        %1058 = vdwg.mxu0
        %v1059 = vadd.f32 %v915, %v1045
        %v1060 = vadd.f32 %v918, %v1048
        %v1061 = vadd.f32 %v923, %v1053
        %v1062 = vadd.f32 %v926, %v1056
        %v1067 = vrot.slane %v1059, 7
        %v1068 = vrot.slane %v1060, 7
        %v1069 = vrot.slane %v1061, 7
        %v1070 = vrot.slane %v1062, 7
        %vm1075 = vcmask 1040384
        %v1076 = vsel %vm1075, 0.0, %v1067
        %v1077 = vsel %vm1075, 0.0, %v1068
        %v1078 = vsel %vm1075, 0.0, %v1069
        %v1079 = vsel %vm1075, 0.0, %v1070
        %v1080 = vadd.f32 %v991, %v1076
        %v1081 = vadd.f32 %v992, %v1077
        %v1082 = vadd.f32 %v993, %v1078
        %v1083 = vadd.f32 %v994, %v1079
        %v1084 = vsub.f32 0.0, %v1080
        %v1085 = vsub.f32 0.0, %v1081
        %v1086 = vsub.f32 0.0, %v1082
        %v1087 = vsub.f32 0.0, %v1083
        %v1088 = vmul.f32 %v1084, 1.442695
        %v1089 = vpow.pop %v1088
        %v1090 = vmul.f32 %v1085, 1.442695
        %v1091 = vpow.pop %v1090
        %v1092 = vmul.f32 %v1086, 1.442695
        %v1093 = vpow.pop %v1092
        %v1094 = vmul.f32 %v1087, 1.442695
        %v1095 = vpow.pop %v1094
        %v1096 = vadd.f32 %v1089, 1.0
        %v1097 = vadd.f32 %v1091, 1.0
        %v1098 = vadd.f32 %v1093, 1.0
        %v1099 = vadd.f32 %v1095, 1.0
        %v1100 = vrcp.pop %v1096
        %v1101 = vrcp.pop %v1097
        %v1102 = vrcp.pop %v1098
        %v1103 = vrcp.pop %v1099
        %v1104 = vmul.f32 %v1080, %v1100
        %v1105 = vmul.f32 %v1081, %v1101
        %v1106 = vmul.f32 %v1082, %v1102
        %v1107 = vmul.f32 %v1083, %v1103
        %v1108 = vmax.bf16 %v422, %v423
        %v1109 = vmax.bf16 %v424, %v425
        %v1110 = vmax.bf16 %v426, %v427
        %v1111 = vmax.bf16 %v428, %v429
        %1116 = vrot.lane.b32.xlu0 %v1108, 124
        %v1117 = vpop.permute.xlu0 %1116
        %1118 = vrot.lane.b32.xlu0 %v1109, 124
        %v1119 = vpop.permute.xlu0 %1118
        %1120 = vrot.lane.b32.xlu0 %v1110, 124
        %v1121 = vpop.permute.xlu0 %1120
        %1122 = vrot.lane.b32.xlu0 %v1111, 124
        %v1123 = vpop.permute.xlu0 %1122
        %v1128 = vmax.bf16 %v1108, %v1117
        %v1129 = vmax.bf16 %v1109, %v1119
        %v1130 = vmax.bf16 %v1110, %v1121
        %v1131 = vmax.bf16 %v1111, %v1123
        %v1132 = vld [vmem:[%s2] sm:$0x3]
        %v1133 = vld [vmem:[%s3] sm:$0x1]
        %v1135 = vlaneseq
        %v1136 = vshrl.u32 %v1135, 7
        %v1137 = vsub.s32 0, %v1136
        %v1138 = vrot.slane %v1133, %v1137
        %v1144 = vunpack.c.l.b16 %v1128
        %v1145 = vunpack.c.l.b16 %v1129
        %v1146 = vunpack.c.l.b16 %v1130
        %v1147 = vunpack.c.l.b16 %v1131
        %v1148 = vpack.c.b16 %v1145, %v1144
        %v1149 = vpack.c.b16 %v1147, %v1146
        %v1151 = vsel %vm807, %v1148, 0
        %v1154 = vsel %vm807, %v1149, 0
        %v1157 = vsel %vm814, %v1132, 0
        %1159 = vmatprep.subr.bf16.mxu0 0
        %1160 = vmatpush1.bf16.msra.mxu0 %v1157
        %1161 = vmatprep.subr.bf16.mxu0 0
        %1162 = vmatpush1.bf16.msra.mxu0 0
        %1163 = vmatprep.subr.bf16.mxu0 0
        %1164 = vmatpush1.bf16.msra.mxu0 0
        %1165 = vmatprep.subr.bf16.mxu0 0
        %1166 = vmatpush1.bf16.msra.mxu0 0
        %1167 = vmatprep.subr.bf16.mxu0 0
        %1168 = vmatpush1.bf16.msra.mxu0 0
        %1169 = vmatprep.subr.bf16.mxu0 0
        %1170 = vmatpush1.bf16.msra.mxu0 0
        %1171 = vmatprep.subr.bf16.mxu0 0
        %1172 = vmatpush1.bf16.msra.mxu0 0
        %1173 = vmatprep.subr.bf16.mxu0 0
        %1174 = vmatpush1.bf16.msra.mxu0 0
        %1175 = vmatprep.subr.bf16.mxu0 0
        %1176 = vmatpush1.bf16.msra.mxu0 0
        %1177 = vmatprep.subr.bf16.mxu0 0
        %1178 = vmatpush1.bf16.msra.mxu0 0
        %1179 = vmatprep.subr.bf16.mxu0 0
        %1180 = vmatpush1.bf16.msra.mxu0 0
        %1181 = vmatprep.subr.bf16.mxu0 0
        %1182 = vmatpush1.bf16.msra.mxu0 0
        %1183 = vmatprep.subr.bf16.mxu0 0
        %1184 = vmatpush1.bf16.msra.mxu0 0
        %1185 = vmatprep.subr.bf16.mxu0 0
        %1186 = vmatpush1.bf16.msra.mxu0 0
        %1187 = vmatprep.subr.bf16.mxu0 0
        %1188 = vmatpush1.bf16.msra.mxu0 0
        %1189 = vmatprep.subr.bf16.mxu0 0
        %1190 = vmatpush1.bf16.msra.mxu0 0
        %1191 = vmatprep.mubr.bf16.mxu0 0
        %1192 = vmatmul.mubr.bf16.gmra.mrb[0].mxu0 %v1151
        %v1193 = vpop.f32.mrb[0].mxu0
        %v1194 = vadd.f32 %v1138, %v1193
        %v1195 = vpop.f32.mrb[0].mxu0
        %v1196 = vpop.f32.mrb[0].mxu0
        %v1197 = vadd.f32 %v1138, %v1196
        %v1198 = vpop.f32.mrb[0].mxu0
        %1199 = vmatprep.mubr.bf16.mxu0 0
        %1200 = vmatmul.mubr.bf16.gmra.mrb[0].mxu0 %v1154
        %v1201 = vpop.f32.mrb[0].mxu0
        %v1202 = vadd.f32 %v1138, %v1201
        %v1203 = vpop.f32.mrb[0].mxu0
        %v1204 = vpop.f32.mrb[0].mxu0
        %v1205 = vadd.f32 %v1138, %v1204
        %v1206 = vpop.f32.mrb[0].mxu0
        %1207 = vdwg.mxu0
        %v1208 = vsub.f32 0.0, %v1194
        %v1209 = vsub.f32 0.0, %v1197
        %v1210 = vsub.f32 0.0, %v1202
        %v1211 = vsub.f32 0.0, %v1205
        %v1212 = vmul.f32 %v1208, 1.442695
        %v1213 = vpow.pop %v1212
        %v1214 = vmul.f32 %v1209, 1.442695
        %v1215 = vpow.pop %v1214
        %v1216 = vmul.f32 %v1210, 1.442695
        %v1217 = vpow.pop %v1216
        %v1218 = vmul.f32 %v1211, 1.442695
        %v1219 = vpow.pop %v1218
        %v1220 = vadd.f32 %v1213, 1.0
        %v1221 = vadd.f32 %v1215, 1.0
        %v1222 = vadd.f32 %v1217, 1.0
        %v1223 = vadd.f32 %v1219, 1.0
        %v1224 = vrcp.pop %v1220
        %v1225 = vrcp.pop %v1221
        %v1226 = vrcp.pop %v1222
        %v1227 = vrcp.pop %v1223
        %v1228 = vmul.f32 %v1194, %v1224
        %v1229 = vmul.f32 %v1197, %v1225
        %v1230 = vmul.f32 %v1202, %v1226
        %v1231 = vmul.f32 %v1205, %v1227
        %1236 = vrot.lane.b32.xlu0 %v1228, 4
        %v1237 = vpop.permute.xlu0 %1236
        %1238 = vrot.lane.b32.xlu0 %v1229, 4
        %v1239 = vpop.permute.xlu0 %1238
        %1240 = vrot.lane.b32.xlu0 %v1230, 4
        %v1241 = vpop.permute.xlu0 %1240
        %1242 = vrot.lane.b32.xlu0 %v1231, 4
        %v1243 = vpop.permute.xlu0 %1242
        %v1248 = vsel %vm807, %v1104, %v1237
        %v1249 = vsel %vm807, %v1105, %v1239
        %v1250 = vsel %vm807, %v1106, %v1241
        %v1251 = vsel %vm807, %v1107, %v1243
        %1252 = vst.msk [vmem:[%s393] sm:$0xff] %vm458, %v1248
        %1253 = vst.msk [vmem:[%s393 + $0x8] sm:$0xff] %vm458, %v1249
        %1254 = vst.msk [vmem:[%s393 + $0x10] sm:$0xff] %vm458, %v1250
        %1255 = vst.msk [vmem:[%s393 + $0x18] sm:$0xff] %vm458, %v1251
        %s1256 = sand.u32 %s256, 1
        %s1257 = scalar_lea.sflag [#allocation3], %s1256
        %s1258 = sand.u32 %s256, 1
        %s1259 = smul.addr %s1258, 32
        %s1260 = scalar_lea.vmem [#allocation2], %s1259
        // Predicated region
        $region57: #{tpu_custom_call.1} parent=55 // pred_check
          %p1261 = pneg %p266
        $region58: #{tpu_custom_call.1} parent=55 // pred_check_branch
          %1263 = sbr.rel (%p1261) target = $region60
        $region59: #{tpu_custom_call.1} parent=55 // pred_region
          %s1264 = smul.u32 4, %s28
          %s1266 = ssub.s32 512, 512
          %1267 = vsyncadd %s1257, %s1266
          %s1268 = smul.addr %s27, 8
          %s1269 = sadd.s32 %s1264, %s1268
          %s1270 = smul.addr %s1269, 128
          %s1271 = scalar_lea.hbm %s9, %s1270
          %s1272 = sshll.u32 %s1260, 4
          %s1273 = int_to_ptr.vmem [resolvable:$true] %s1272
          %1278 = dma.vmem_to_hbm [thread:$0]  %s1273, 512, %s1271, %s1257, 128, 128, 8
        $region60: #{tpu_custom_call.1} parent=55 // pred_fallthru
          _
      $region56: #{tpu_custom_call.1} parent=5 // pred_fallthru
        _
      %p1279 = scmp.le.s32.totalorder 2, %s18
      // Predicated region
      $region61: #{tpu_custom_call.1} parent=5 // pred_check
        %p1280 = pneg %p1279
      $region62: #{tpu_custom_call.1} parent=5 // pred_check_branch
        %1282 = sbr.rel (%p1280) target = $region64
      $region63: #{tpu_custom_call.1} parent=5 // pred_region
        %s1283 = ssub.s32 %s18, 2
        // Predicated region
        $region65: #{tpu_custom_call.1} parent=63 // pred_check
          %p1284 = pneg %p272
        $region66: #{tpu_custom_call.1} parent=63 // pred_check_branch
          %1286 = sbr.rel (%p1284) target = $region68
        $region67: #{tpu_custom_call.1} parent=63 // pred_region
          %s1287 = sand.u32 %s257, 1
          %s1288 = scalar_lea.sflag [#allocation3], %s1287
          %s1289 = sand.u32 %s257, 1
          %s1290 = smul.addr %s1289, 32
          %s1291 = scalar_lea.vmem [#allocation2], %s1290
          %1292 = dma.done %s1288, 512
        $region68: #{tpu_custom_call.1} parent=63 // pred_fallthru
          _
      $region64: #{tpu_custom_call.1} parent=5 // pred_fallthru
        _
    $region6: #{tpu_custom_call.1} parent=1 // loop_footer
      %s22 = sadd.s32 1, %s18
    $region7: #{tpu_custom_call.1} parent=1 // loop_footer_branch
      %17 = sbr.rel target = $region3
    $region8: #{tpu_custom_call.1} parent=1 // loop_exit
      _
    %1293 = vsyncpa [#allocation3], 1
    %s1294 = scalar_lea.sflag [#allocation3], 1
    %1295 = vsyncpa %s1294, 1

</llo_original>
